<compile_context>
chip_gen: v6e
topology: v6e:2x2x1
jax: 0.10.0
libtpu: 0.0.40
codegen_flags: <defaults>
</compile_context>

<pallas_src>
import functools
import math

import jax
import jax.numpy as jnp
import numpy as np
from jax import lax
from jax.experimental import pallas as pl
from jax.experimental.pallas import tpu as pltpu

EPS = 1e-5


# --------------------------------------------------------------------------------------
# Wrapper-side weight preparation (pure layout glue, runs once in XLA)
# --------------------------------------------------------------------------------------
def _conv3x3_row_weights(w_oihw, win, wo, stride):
    """OIHW (Cout, Cin, 3, 3) -> (3, Win*Cin, Wo*Cout) row-band matmul slabs.

    Slab kh implements
        out[(n,h),(w,c)] += sum_{kw,ci} x[n, h*s+kh-1, w*s+kw-1, ci] * W[c, ci, kh, kw]
    with the W-direction padding (=1) and stride folded in as structural zeros.
    """
    cout, cin = int(w_oihw.shape[0]), int(w_oihw.shape[1])
    w = jnp.transpose(w_oihw, (2, 3, 1, 0))                       # (3, 3, Cin, Cout)
    kh, kw, wj, ci, co = np.meshgrid(np.arange(3), np.arange(3), np.arange(wo),
                                     np.arange(cin), np.arange(cout), indexing="ij")
    wi = wj * stride + kw - 1                                     # input col (pad = 1)
    ok = (wi >= 0) & (wi < win)
    kh, kw, wj, ci, co, wi = (a[ok] for a in (kh, kw, wj, ci, co, wi))
    slabs = jnp.zeros((3, win * cin, wo * cout), jnp.float32)
    return slabs.at[kh, wi * cin + ci, wj * cout + co].set(w[kh, kw, ci, co])


def _conv1x1_row_weights(w_oi11, win, wo, stride):
    """OIHW (Cout, Cin, 1, 1) -> (Win*Cin, Wo*Cout) slab for the strided 1x1 shortcut."""
    cout, cin = int(w_oi11.shape[0]), int(w_oi11.shape[1])
    w = jnp.transpose(w_oi11[:, :, 0, 0], (1, 0))                 # (Cin, Cout)
    wj, ci, co = np.meshgrid(np.arange(wo), np.arange(cin), np.arange(cout), indexing="ij")
    rows = (wj * stride * cin + ci).ravel()
    cols = (wj * cout + co).ravel()
    slab = jnp.zeros((win * cin, wo * cout), jnp.float32)
    return slab.at[rows, cols].set(w[ci.ravel(), co.ravel()])


def _padded_cin(cin, win, lane=128):
    """Smallest cin' >= cin with win*cin' a multiple of 128 (lane-dense LHS/scratch)."""
    q = lane // math.gcd(win, lane)
    cin_p = ((cin + q - 1) // q) * q
    return cin_p if cin_p <= 8 * cin else cin     # don't pay >8x MXU K for lane density


# --------------------------------------------------------------------------------------
# Pallas kernel: the whole ResBlock forward
# --------------------------------------------------------------------------------------
def resblock_kernel(x_ref, r1_ref, g1_ref, be1_ref,
                    r2_ref, g2_ref, be2_ref,
                    rs_ref, bs_ref, p_ref,
                    out_ref, xpad_ref, h1pad_ref, *, stride):
    """Rows index (n, h_out); lanes index fused (w_out, c_out) -> lane-dense throughout."""
    N, Hin, WCin = x_ref.shape
    _, Ho, WCout = out_ref.shape
    M = N * Ho
    cdt = r1_ref.dtype                          # MXU operand dtype (bf16 default)

    def band(ref, start, step):
        """Row band [start, start+step, ...] (Ho rows) sliced straight off a ref."""
        if step == 1:
            return ref[:, pl.ds(start, Ho), :]
        return ref[:, pl.ds(start, Ho, step), :]

    proj = p_ref[...]                           # (WCout, WCout): per-channel mean proj+bcast

    def batchnorm(h, g_l, be_l):
        """Train-mode BN as per-lane scale/shift; sums on the XLU, one small matmul."""
        csum = jnp.sum(h, axis=0, keepdims=True)                  # (1, Wo*Cout)
        csq = jnp.sum(h * h, axis=0, keepdims=True)               # (1, Wo*Cout)
        mean_l = jnp.dot(csum, proj, preferred_element_type=jnp.float32)
        ex2_l = jnp.dot(csq, proj, preferred_element_type=jnp.float32)
        var_l = jnp.maximum(ex2_l - mean_l * mean_l, 0.0)         # clamp f32 cancellation
        scale_l = g_l * lax.rsqrt(var_l + EPS)
        return h * scale_l + (be_l - mean_l * scale_l)

    # ---- conv1: H-pad x in scratch (border rows only; W padding is in the weight zeros)
    zx = jnp.zeros((N, 1, WCin), xpad_ref.dtype)
    xpad_ref[:, 0:1, :] = zx
    xpad_ref[:, Hin + 1:Hin + 2, :] = zx
    xpad_ref[:, 1:Hin + 1, :] = x_ref[...]

    # Center (kh=1) band comes straight from x_ref; cast once, reused by the shortcut.
    xc = band(x_ref, 0, stride).reshape(M, WCin).astype(cdt)
    b0 = band(xpad_ref, 0, stride).reshape(M, WCin).astype(cdt)
    h1 = jnp.dot(b0, r1_ref[0], preferred_element_type=jnp.float32)
    h1 += jnp.dot(xc, r1_ref[1], preferred_element_type=jnp.float32)
    b2 = band(xpad_ref, 2, stride).reshape(M, WCin).astype(cdt)
    h1 += jnp.dot(b2, r1_ref[2], preferred_element_type=jnp.float32)

    # ---- BN1 + ReLU (conv bias b1 dropped: cancelled by the batch-mean subtraction) ----
    h1 = jnp.maximum(batchnorm(h1, g1_ref[...], be1_ref[...]), 0.0)
    h1c = h1.astype(cdt)                        # cast once; conv2's center tap

    # ---- conv2 (stride 1): only the off-center bands go through the padded scratch ----
    zh = jnp.zeros((N, 1, WCout), h1pad_ref.dtype)
    h1pad_ref[:, 0:1, :] = zh
    h1pad_ref[:, Ho + 1:Ho + 2, :] = zh
    h1pad_ref[:, 1:Ho + 1, :] = h1.reshape(N, Ho, WCout)

    d0 = band(h1pad_ref, 0, 1).reshape(M, WCout).astype(cdt)
    h2 = jnp.dot(d0, r2_ref[0], preferred_element_type=jnp.float32)
    h2 += jnp.dot(h1c, r2_ref[1], preferred_element_type=jnp.float32)
    d2 = band(h1pad_ref, 2, 1).reshape(M, WCout).astype(cdt)
    h2 += jnp.dot(d2, r2_ref[2], preferred_element_type=jnp.float32)

    # ---- BN2 (no ReLU yet; conv bias b2 dropped as above) ------------------------------
    h2 = batchnorm(h2, g2_ref[...], be2_ref[...])

    # ---- shortcut 1x1 conv: reuses conv1's already-cast center band ---------------------
    sc = jnp.dot(xc, rs_ref[...], preferred_element_type=jnp.float32) + bs_ref[...]

    # ---- residual add + ReLU; lane-dense store (Wo*Cout is a multiple of 128 here) -----
    out_ref[...] = jnp.maximum(h2 + sc, 0.0).reshape(N, Ho, WCout)


# --------------------------------------------------------------------------------------
# NHWC entry point: activations stay lane-dense (N, H, W*C) end-to-end, no transposes.
# --------------------------------------------------------------------------------------
def resblock_forward_nhwc(x_nhwc, params, stride=1, compute_dtype=jnp.bfloat16):
    x = x_nhwc.astype(jnp.float32)
    N, Hin, Win, Cin = x.shape
    Cout = params["w1"].shape[0]
    Ho = (Hin - 1) // stride + 1
    Wo = (Win - 1) // stride + 1

    # Pad Cin so Win*Cin is a multiple of 128 (lane-dense LHS / scratch / DMA).
    cin_p = _padded_cin(Cin, Win)
    if cin_p != Cin:
        x = jnp.pad(x, ((0, 0), (0, 0), (0, 0), (0, cin_p - Cin)))
    x2d = x.reshape(N, Hin, Win * cin_p)

    cdt = compute_dtype
    w1 = jnp.pad(params["w1"], ((0, 0), (0, cin_p - Cin), (0, 0), (0, 0)))
    ws = jnp.pad(params["ws"], ((0, 0), (0, cin_p - Cin), (0, 0), (0, 0)))
    r1 = _conv3x3_row_weights(w1, Win, Wo, stride).astype(cdt)            # (3, Win*Cin', Wo*Cout)
    r2 = _conv3x3_row_weights(params["w2"], Wo, Wo, 1).astype(cdt)        # (3, Wo*Cout, Wo*Cout)
    rs = _conv1x1_row_weights(ws, Win, Wo, stride).astype(cdt)            # (Win*Cin', Wo*Cout)
    # NOTE: b1/b2 intentionally not passed - train-mode BN cancels them exactly.

    lane = lambda v: jnp.tile(v.astype(jnp.float32), (Wo,)).reshape(1, Wo * Cout)
    # Fused BN projection: P[l,l'] = [channel(l)==channel(l')] / (N*Ho*Wo); a single
    # lane-dense matmul maps per-lane sums to per-lane channel means / E[x^2].
    ch = jnp.arange(Wo * Cout, dtype=jnp.int32) % Cout
    proj = (ch[:, None] == ch[None, :]).astype(jnp.float32) / float(N * Ho * Wo)

    vmem = pl.BlockSpec(memory_space=pltpu.MemorySpace.VMEM)
    out = pl.pallas_call(
        functools.partial(resblock_kernel, stride=stride),
        out_shape=jax.ShapeDtypeStruct((N, Ho, Wo * Cout), jnp.float32),
        in_specs=[vmem] * 10,
        out_specs=vmem,
        scratch_shapes=[pltpu.VMEM((N, Hin + 2, Win * cin_p), jnp.float32),  # H-padded x
                        pltpu.VMEM((N, Ho + 2, Wo * Cout), jnp.float32)],    # H-padded h1
        compiler_params=pltpu.CompilerParams(vmem_limit_bytes=32 * 1024 * 1024),
    )(x2d, r1, lane(params["g1"]), lane(params["be1"]),
      r2, lane(params["g2"]), lane(params["be2"]),
      rs, lane(params["bs"]), proj)
    return out.reshape(N, Ho, Wo, Cout)


# --------------------------------------------------------------------------------------
# NCHW wrapper: only for parity with the PyTorch module / reference check.  Real
# pipelines should call resblock_forward_nhwc and skip both HBM transposes.
# --------------------------------------------------------------------------------------
def resblock_forward(x_nchw, params, stride=1, compute_dtype=jnp.bfloat16):
    x_nhwc = jnp.transpose(x_nchw, (0, 2, 3, 1))
    out = resblock_forward_nhwc(x_nhwc, params, stride=stride, compute_dtype=compute_dtype)
    return jnp.transpose(out, (0, 3, 1, 2))


# --------------------------------------------------------------------------------------
# Pure-JAX reference (NCHW), mirrors the PyTorch module in train mode (includes b1/b2)
# --------------------------------------------------------------------------------------
def resblock_reference(x, p, stride=1):
    def conv(x, w, b, s, pad):
        y = lax.conv_general_dilated(x, w, (s, s), [(pad, pad), (pad, pad)],
                                     dimension_numbers=("NCHW", "OIHW", "NCHW"))
        return y + b.reshape(1, -1, 1, 1)

    def bn(y, g, be):
        mean = y.mean(axis=(0, 2, 3), keepdims=True)
        var = ((y - mean) ** 2).mean(axis=(0, 2, 3), keepdims=True)
        return (y - mean) * lax.rsqrt(var + EPS) * g.reshape(1, -1, 1, 1) + be.reshape(1, -1, 1, 1)

    h = jnp.maximum(bn(conv(x, p["w1"], p["b1"], stride, 1), p["g1"], p["be1"]), 0.0)
    h = bn(conv(h, p["w2"], p["b2"], 1, 1), p["g2"], p["be2"])
    sc = conv(x, p["ws"], p["bs"], stride, 0)
    return jnp.maximum(h + sc, 0.0)


if __name__ == "__main__":
    # batch=2, inchannels=4, outchannels=8, spatial=16x16, stride=1
    # (inchannels != outchannels -> the shortcut is a 1x1 conv, as in the PyTorch module).
    N, Cin, Cout, H, W, stride = 2, 4, 8, 16, 16, 1

    key = jax.random.PRNGKey(0)
    keys = jax.random.split(key, 8)
    params = {
        "w1": 0.1 * jax.random.normal(keys[0], (Cout, Cin, 3, 3), jnp.float32),
        "b1": 0.1 * jax.random.normal(keys[1], (Cout,), jnp.float32),
        "g1": jnp.ones((Cout,), jnp.float32),
        "be1": jnp.zeros((Cout,), jnp.float32),
        "w2": 0.1 * jax.random.normal(keys[2], (Cout, Cout, 3, 3), jnp.float32),
        "b2": 0.1 * jax.random.normal(keys[3], (Cout,), jnp.float32),
        "g2": jnp.ones((Cout,), jnp.float32),
        "be2": jnp.zeros((Cout,), jnp.float32),
        "ws": 0.1 * jax.random.normal(keys[4], (Cout, Cin, 1, 1), jnp.float32),
        "bs": 0.1 * jax.random.normal(keys[5], (Cout,), jnp.float32),
    }
    x = jax.random.normal(keys[6], (N, Cin, H, W), jnp.float32)

    ref = jax.block_until_ready(resblock_reference(x, params, stride=stride))

    # f32 MXU operands: tight check (also validates the exact b1/b2 cancellation).
    out_f32 = jax.block_until_ready(
        resblock_forward(x, params, stride=stride, compute_dtype=jnp.float32))
    np.testing.assert_allclose(np.asarray(out_f32), np.asarray(ref), rtol=1e-3, atol=1e-3)

    # bf16 MXU operands (default fast path on v6e/v7x): looser tolerance for bf16 rounding.
    out_bf16 = jax.block_until_ready(
        resblock_forward(x, params, stride=stride, compute_dtype=jnp.bfloat16))
    np.testing.assert_allclose(np.asarray(out_bf16), np.asarray(ref), rtol=2e-2, atol=3e-2)

    print("KERNEL_OK")
</pallas_src>

<mosaic_0001>
module attributes {stable_mosaic.version = 11 : i64} {
  func.func @resblock_kernel(%arg0: memref<2x16x128xf32, #tpu.memory_space<vmem>>, %arg1: memref<3x128x128xf32, #tpu.memory_space<vmem>>, %arg2: memref<1x128xf32, #tpu.memory_space<vmem>>, %arg3: memref<1x128xf32, #tpu.memory_space<vmem>>, %arg4: memref<3x128x128xf32, #tpu.memory_space<vmem>>, %arg5: memref<1x128xf32, #tpu.memory_space<vmem>>, %arg6: memref<1x128xf32, #tpu.memory_space<vmem>>, %arg7: memref<128x128xf32, #tpu.memory_space<vmem>>, %arg8: memref<1x128xf32, #tpu.memory_space<vmem>>, %arg9: memref<128x128xf32, #tpu.memory_space<vmem>>, %arg10: memref<2x16x128xf32, #tpu.memory_space<vmem>>, %arg11: memref<2x18x128xf32, #tpu.memory_space<vmem>>, %arg12: memref<2x18x128xf32, #tpu.memory_space<vmem>>) attributes {dimension_semantics = [], scalar_prefetch = 0 : i64, scratch_operands = 2 : i64, tpu.core_type = #tpu.core_type<tc>} {
    %c0 = arith.constant 0 : index
    %c0_0 = arith.constant 0 : index
    %0 = vector.load %arg9[%c0, %c0_0] : memref<128x128xf32, #tpu.memory_space<vmem>>, vector<128x128xf32>
    %cst = arith.constant 0.000000e+00 : f32
    %1 = vector.broadcast %cst : f32 to vector<2x1x128xf32>
    %c0_1 = arith.constant 0 : index
    %c0_2 = arith.constant 0 : index
    %c0_3 = arith.constant 0 : index
    %2 = vector.load %arg11[%c0_1, %c0_2, %c0_3] : memref<2x18x128xf32, #tpu.memory_space<vmem>>, vector<2x1x128xf32>
    tpu.vector_store %arg11[%c0_1, %c0_2, %c0_3], %1 {strides = array<i32>} : memref<2x18x128xf32, #tpu.memory_space<vmem>>, vector<2x1x128xf32>,
    %c0_4 = arith.constant 0 : index
    %c17 = arith.constant 17 : index
    %c0_5 = arith.constant 0 : index
    %3 = vector.load %arg11[%c0_4, %c17, %c0_5] : memref<2x18x128xf32, #tpu.memory_space<vmem>>, vector<2x1x128xf32>
    tpu.vector_store %arg11[%c0_4, %c17, %c0_5], %1 {strides = array<i32>} : memref<2x18x128xf32, #tpu.memory_space<vmem>>, vector<2x1x128xf32>,
    %c0_6 = arith.constant 0 : index
    %c0_7 = arith.constant 0 : index
    %c0_8 = arith.constant 0 : index
    %4 = vector.load %arg0[%c0_6, %c0_7, %c0_8] : memref<2x16x128xf32, #tpu.memory_space<vmem>>, vector<2x16x128xf32>
    %c0_9 = arith.constant 0 : index
    %c1 = arith.constant 1 : index
    %c0_10 = arith.constant 0 : index
    %5 = vector.load %arg11[%c0_9, %c1, %c0_10] : memref<2x18x128xf32, #tpu.memory_space<vmem>>, vector<2x16x128xf32>
    tpu.vector_store %arg11[%c0_9, %c1, %c0_10], %4 {strides = array<i32>} : memref<2x18x128xf32, #tpu.memory_space<vmem>>, vector<2x16x128xf32>,
    %c0_11 = arith.constant 0 : index
    %c0_12 = arith.constant 0 : index
    %c0_13 = arith.constant 0 : index
    %6 = vector.load %arg0[%c0_11, %c0_12, %c0_13] : memref<2x16x128xf32, #tpu.memory_space<vmem>>, vector<2x16x128xf32>
    %7 = vector.shape_cast %6 : vector<2x16x128xf32> to vector<32x128xf32>
    %c0_14 = arith.constant 0 : index
    %c0_15 = arith.constant 0 : index
    %c0_16 = arith.constant 0 : index
    %8 = vector.load %arg11[%c0_14, %c0_15, %c0_16] : memref<2x18x128xf32, #tpu.memory_space<vmem>>, vector<2x16x128xf32>
    %9 = vector.shape_cast %8 : vector<2x16x128xf32> to vector<32x128xf32>
    %c0_17 = arith.constant 0 : index
    %c0_18 = arith.constant 0 : index
    %c0_19 = arith.constant 0 : index
    %10 = vector.load %arg1[%c0_17, %c0_18, %c0_19] : memref<3x128x128xf32, #tpu.memory_space<vmem>>, vector<1x128x128xf32>
    %11 = vector.shape_cast %10 : vector<1x128x128xf32> to vector<128x128xf32>
    %cst_20 = arith.constant dense<0.000000e+00> : vector<32x128xf32>
    %12 = tpu.matmul %9, %11, %cst_20 {dimension_numbers = #tpu.dot_dimension_numbers<[1], [0], [0], [1], [0, 0, 1, 1], [], []>} : vector<32x128xf32>, vector<128x128xf32>, vector<32x128xf32> -> vector<32x128xf32>
    %c1_21 = arith.constant 1 : index
    %c0_22 = arith.constant 0 : index
    %c0_23 = arith.constant 0 : index
    %13 = vector.load %arg1[%c1_21, %c0_22, %c0_23] : memref<3x128x128xf32, #tpu.memory_space<vmem>>, vector<1x128x128xf32>
    %14 = vector.shape_cast %13 : vector<1x128x128xf32> to vector<128x128xf32>
    %cst_24 = arith.constant dense<0.000000e+00> : vector<32x128xf32>
    %15 = tpu.matmul %7, %14, %cst_24 {dimension_numbers = #tpu.dot_dimension_numbers<[1], [0], [0], [1], [0, 0, 1, 1], [], []>} : vector<32x128xf32>, vector<128x128xf32>, vector<32x128xf32> -> vector<32x128xf32>
    %16 = arith.addf %12, %15 : vector<32x128xf32>
    %c0_25 = arith.constant 0 : index
    %c2 = arith.constant 2 : index
    %c0_26 = arith.constant 0 : index
    %17 = vector.load %arg11[%c0_25, %c2, %c0_26] : memref<2x18x128xf32, #tpu.memory_space<vmem>>, vector<2x16x128xf32>
    %18 = vector.shape_cast %17 : vector<2x16x128xf32> to vector<32x128xf32>
    %c2_27 = arith.constant 2 : index
    %c0_28 = arith.constant 0 : index
    %c0_29 = arith.constant 0 : index
    %19 = vector.load %arg1[%c2_27, %c0_28, %c0_29] : memref<3x128x128xf32, #tpu.memory_space<vmem>>, vector<1x128x128xf32>
    %20 = vector.shape_cast %19 : vector<1x128x128xf32> to vector<128x128xf32>
    %cst_30 = arith.constant dense<0.000000e+00> : vector<32x128xf32>
    %21 = tpu.matmul %18, %20, %cst_30 {dimension_numbers = #tpu.dot_dimension_numbers<[1], [0], [0], [1], [0, 0, 1, 1], [], []>} : vector<32x128xf32>, vector<128x128xf32>, vector<32x128xf32> -> vector<32x128xf32>
    %22 = arith.addf %16, %21 : vector<32x128xf32>
    %c0_31 = arith.constant 0 : index
    %c0_32 = arith.constant 0 : index
    %23 = vector.load %arg2[%c0_31, %c0_32] : memref<1x128xf32, #tpu.memory_space<vmem>>, vector<1x128xf32>
    %c0_33 = arith.constant 0 : index
    %c0_34 = arith.constant 0 : index
    %24 = vector.load %arg3[%c0_33, %c0_34] : memref<1x128xf32, #tpu.memory_space<vmem>>, vector<1x128xf32>
    %cst_35 = arith.constant dense<0.000000e+00> : vector<128xf32>
    %25 = vector.multi_reduction <add>, %22, %cst_35 [0] : vector<32x128xf32> to vector<128xf32>
    %26 = vector.shape_cast %25 : vector<128xf32> to vector<1x128xf32>
    %27 = arith.mulf %22, %22 : vector<32x128xf32>
    %cst_36 = arith.constant dense<0.000000e+00> : vector<128xf32>
    %28 = vector.multi_reduction <add>, %27, %cst_36 [0] : vector<32x128xf32> to vector<128xf32>
    %29 = vector.shape_cast %28 : vector<128xf32> to vector<1x128xf32>
    %cst_37 = arith.constant dense<0.000000e+00> : vector<1x128xf32>
    %30 = tpu.matmul %26, %0, %cst_37 {dimension_numbers = #tpu.dot_dimension_numbers<[1], [0], [0], [1], [0, 0, 1, 1], [], []>} : vector<1x128xf32>, vector<128x128xf32>, vector<1x128xf32> -> vector<1x128xf32>
    %cst_38 = arith.constant dense<0.000000e+00> : vector<1x128xf32>
    %31 = tpu.matmul %29, %0, %cst_38 {dimension_numbers = #tpu.dot_dimension_numbers<[1], [0], [0], [1], [0, 0, 1, 1], [], []>} : vector<1x128xf32>, vector<128x128xf32>, vector<1x128xf32> -> vector<1x128xf32>
    %32 = arith.mulf %30, %30 : vector<1x128xf32>
    %33 = arith.subf %31, %32 : vector<1x128xf32>
    %cst_39 = arith.constant 0.000000e+00 : f32
    %34 = vector.broadcast %cst_39 : f32 to vector<1x128xf32>
    %35 = arith.maximumf %33, %34 : vector<1x128xf32>
    %cst_40 = arith.constant 9.99999974E-6 : f32
    %36 = vector.broadcast %cst_40 : f32 to vector<1x128xf32>
    %37 = arith.addf %35, %36 : vector<1x128xf32>
    %38 = math.rsqrt %37 : vector<1x128xf32>
    %39 = arith.mulf %23, %38 : vector<1x128xf32>
    %40 = vector.broadcast %39 : vector<1x128xf32> to vector<32x128xf32>
    %41 = arith.mulf %22, %40 : vector<32x128xf32>
    %42 = arith.mulf %30, %39 : vector<1x128xf32>
    %43 = arith.subf %24, %42 : vector<1x128xf32>
    %44 = vector.broadcast %43 : vector<1x128xf32> to vector<32x128xf32>
    %45 = arith.addf %41, %44 : vector<32x128xf32>
    %cst_41 = arith.constant 0.000000e+00 : f32
    %46 = vector.broadcast %cst_41 : f32 to vector<32x128xf32>
    %47 = arith.maximumf %45, %46 : vector<32x128xf32>
    %cst_42 = arith.constant 0.000000e+00 : f32
    %48 = vector.broadcast %cst_42 : f32 to vector<2x1x128xf32>
    %c0_43 = arith.constant 0 : index
    %c0_44 = arith.constant 0 : index
    %c0_45 = arith.constant 0 : index
    %49 = vector.load %arg12[%c0_43, %c0_44, %c0_45] : memref<2x18x128xf32, #tpu.memory_space<vmem>>, vector<2x1x128xf32>
    tpu.vector_store %arg12[%c0_43, %c0_44, %c0_45], %48 {strides = array<i32>} : memref<2x18x128xf32, #tpu.memory_space<vmem>>, vector<2x1x128xf32>,
    %c0_46 = arith.constant 0 : index
    %c17_47 = arith.constant 17 : index
    %c0_48 = arith.constant 0 : index
    %50 = vector.load %arg12[%c0_46, %c17_47, %c0_48] : memref<2x18x128xf32, #tpu.memory_space<vmem>>, vector<2x1x128xf32>
    tpu.vector_store %arg12[%c0_46, %c17_47, %c0_48], %48 {strides = array<i32>} : memref<2x18x128xf32, #tpu.memory_space<vmem>>, vector<2x1x128xf32>,
    %51 = vector.shape_cast %47 : vector<32x128xf32> to vector<2x16x128xf32>
    %c0_49 = arith.constant 0 : index
    %c1_50 = arith.constant 1 : index
    %c0_51 = arith.constant 0 : index
    %52 = vector.load %arg12[%c0_49, %c1_50, %c0_51] : memref<2x18x128xf32, #tpu.memory_space<vmem>>, vector<2x16x128xf32>
    tpu.vector_store %arg12[%c0_49, %c1_50, %c0_51], %51 {strides = array<i32>} : memref<2x18x128xf32, #tpu.memory_space<vmem>>, vector<2x16x128xf32>,
    %c0_52 = arith.constant 0 : index
    %c0_53 = arith.constant 0 : index
    %c0_54 = arith.constant 0 : index
    %53 = vector.load %arg12[%c0_52, %c0_53, %c0_54] : memref<2x18x128xf32, #tpu.memory_space<vmem>>, vector<2x16x128xf32>
    %54 = vector.shape_cast %53 : vector<2x16x128xf32> to vector<32x128xf32>
    %c0_55 = arith.constant 0 : index
    %c0_56 = arith.constant 0 : index
    %c0_57 = arith.constant 0 : index
    %55 = vector.load %arg4[%c0_55, %c0_56, %c0_57] : memref<3x128x128xf32, #tpu.memory_space<vmem>>, vector<1x128x128xf32>
    %56 = vector.shape_cast %55 : vector<1x128x128xf32> to vector<128x128xf32>
    %cst_58 = arith.constant dense<0.000000e+00> : vector<32x128xf32>
    %57 = tpu.matmul %54, %56, %cst_58 {dimension_numbers = #tpu.dot_dimension_numbers<[1], [0], [0], [1], [0, 0, 1, 1], [], []>} : vector<32x128xf32>, vector<128x128xf32>, vector<32x128xf32> -> vector<32x128xf32>
    %c1_59 = arith.constant 1 : index
    %c0_60 = arith.constant 0 : index
    %c0_61 = arith.constant 0 : index
    %58 = vector.load %arg4[%c1_59, %c0_60, %c0_61] : memref<3x128x128xf32, #tpu.memory_space<vmem>>, vector<1x128x128xf32>
    %59 = vector.shape_cast %58 : vector<1x128x128xf32> to vector<128x128xf32>
    %cst_62 = arith.constant dense<0.000000e+00> : vector<32x128xf32>
    %60 = tpu.matmul %47, %59, %cst_62 {dimension_numbers = #tpu.dot_dimension_numbers<[1], [0], [0], [1], [0, 0, 1, 1], [], []>} : vector<32x128xf32>, vector<128x128xf32>, vector<32x128xf32> -> vector<32x128xf32>
    %61 = arith.addf %57, %60 : vector<32x128xf32>
    %c0_63 = arith.constant 0 : index
    %c2_64 = arith.constant 2 : index
    %c0_65 = arith.constant 0 : index
    %62 = vector.load %arg12[%c0_63, %c2_64, %c0_65] : memref<2x18x128xf32, #tpu.memory_space<vmem>>, vector<2x16x128xf32>
    %63 = vector.shape_cast %62 : vector<2x16x128xf32> to vector<32x128xf32>
    %c2_66 = arith.constant 2 : index
    %c0_67 = arith.constant 0 : index
    %c0_68 = arith.constant 0 : index
    %64 = vector.load %arg4[%c2_66, %c0_67, %c0_68] : memref<3x128x128xf32, #tpu.memory_space<vmem>>, vector<1x128x128xf32>
    %65 = vector.shape_cast %64 : vector<1x128x128xf32> to vector<128x128xf32>
    %cst_69 = arith.constant dense<0.000000e+00> : vector<32x128xf32>
    %66 = tpu.matmul %63, %65, %cst_69 {dimension_numbers = #tpu.dot_dimension_numbers<[1], [0], [0], [1], [0, 0, 1, 1], [], []>} : vector<32x128xf32>, vector<128x128xf32>, vector<32x128xf32> -> vector<32x128xf32>
    %67 = arith.addf %61, %66 : vector<32x128xf32>
    %c0_70 = arith.constant 0 : index
    %c0_71 = arith.constant 0 : index
    %68 = vector.load %arg5[%c0_70, %c0_71] : memref<1x128xf32, #tpu.memory_space<vmem>>, vector<1x128xf32>
    %c0_72 = arith.constant 0 : index
    %c0_73 = arith.constant 0 : index
    %69 = vector.load %arg6[%c0_72, %c0_73] : memref<1x128xf32, #tpu.memory_space<vmem>>, vector<1x128xf32>
    %cst_74 = arith.constant dense<0.000000e+00> : vector<128xf32>
    %70 = vector.multi_reduction <add>, %67, %cst_74 [0] : vector<32x128xf32> to vector<128xf32>
    %71 = vector.shape_cast %70 : vector<128xf32> to vector<1x128xf32>
    %72 = arith.mulf %67, %67 : vector<32x128xf32>
    %cst_75 = arith.constant dense<0.000000e+00> : vector<128xf32>
    %73 = vector.multi_reduction <add>, %72, %cst_75 [0] : vector<32x128xf32> to vector<128xf32>
    %74 = vector.shape_cast %73 : vector<128xf32> to vector<1x128xf32>
    %cst_76 = arith.constant dense<0.000000e+00> : vector<1x128xf32>
    %75 = tpu.matmul %71, %0, %cst_76 {dimension_numbers = #tpu.dot_dimension_numbers<[1], [0], [0], [1], [0, 0, 1, 1], [], []>} : vector<1x128xf32>, vector<128x128xf32>, vector<1x128xf32> -> vector<1x128xf32>
    %cst_77 = arith.constant dense<0.000000e+00> : vector<1x128xf32>
    %76 = tpu.matmul %74, %0, %cst_77 {dimension_numbers = #tpu.dot_dimension_numbers<[1], [0], [0], [1], [0, 0, 1, 1], [], []>} : vector<1x128xf32>, vector<128x128xf32>, vector<1x128xf32> -> vector<1x128xf32>
    %77 = arith.mulf %75, %75 : vector<1x128xf32>
    %78 = arith.subf %76, %77 : vector<1x128xf32>
    %cst_78 = arith.constant 0.000000e+00 : f32
    %79 = vector.broadcast %cst_78 : f32 to vector<1x128xf32>
    %80 = arith.maximumf %78, %79 : vector<1x128xf32>
    %cst_79 = arith.constant 9.99999974E-6 : f32
    %81 = vector.broadcast %cst_79 : f32 to vector<1x128xf32>
    %82 = arith.addf %80, %81 : vector<1x128xf32>
    %83 = math.rsqrt %82 : vector<1x128xf32>
    %84 = arith.mulf %68, %83 : vector<1x128xf32>
    %85 = vector.broadcast %84 : vector<1x128xf32> to vector<32x128xf32>
    %86 = arith.mulf %67, %85 : vector<32x128xf32>
    %87 = arith.mulf %75, %84 : vector<1x128xf32>
    %88 = arith.subf %69, %87 : vector<1x128xf32>
    %89 = vector.broadcast %88 : vector<1x128xf32> to vector<32x128xf32>
    %90 = arith.addf %86, %89 : vector<32x128xf32>
    %c0_80 = arith.constant 0 : index
    %c0_81 = arith.constant 0 : index
    %91 = vector.load %arg7[%c0_80, %c0_81] : memref<128x128xf32, #tpu.memory_space<vmem>>, vector<128x128xf32>
    %cst_82 = arith.constant dense<0.000000e+00> : vector<32x128xf32>
    %92 = tpu.matmul %7, %91, %cst_82 {dimension_numbers = #tpu.dot_dimension_numbers<[1], [0], [0], [1], [0, 0, 1, 1], [], []>} : vector<32x128xf32>, vector<128x128xf32>, vector<32x128xf32> -> vector<32x128xf32>
    %c0_83 = arith.constant 0 : index
    %c0_84 = arith.constant 0 : index
    %93 = vector.load %arg8[%c0_83, %c0_84] : memref<1x128xf32, #tpu.memory_space<vmem>>, vector<1x128xf32>
    %94 = vector.broadcast %93 : vector<1x128xf32> to vector<32x128xf32>
    %95 = arith.addf %92, %94 : vector<32x128xf32>
    %96 = arith.addf %90, %95 : vector<32x128xf32>
    %cst_85 = arith.constant 0.000000e+00 : f32
    %97 = vector.broadcast %cst_85 : f32 to vector<32x128xf32>
    %98 = arith.maximumf %96, %97 : vector<32x128xf32>
    %99 = vector.shape_cast %98 : vector<32x128xf32> to vector<2x16x128xf32>
    %c0_86 = arith.constant 0 : index
    %c0_87 = arith.constant 0 : index
    %c0_88 = arith.constant 0 : index
    %100 = vector.load %arg10[%c0_86, %c0_87, %c0_88] : memref<2x16x128xf32, #tpu.memory_space<vmem>>, vector<2x16x128xf32>
    tpu.vector_store %arg10[%c0_86, %c0_87, %c0_88], %99 {strides = array<i32>} : memref<2x16x128xf32, #tpu.memory_space<vmem>>, vector<2x16x128xf32>,
    return
  }
}

</mosaic_0001>

<llo_original>
// kernel: tpu_custom_call.1
$region0: #{tpu_custom_call.1}
  #allocation0 [shape = 'u32[]', space=smem, size = 0x4, offset = 0x4, fixed_abs, tag = 'smem constant byte address 0x4 - core index']
  #allocation1 [shape = 'u32[144,128]{1,0:T(1,128)}', space=vmem, size = 0x12000, scoped, tag = 'internal scratch']
  #allocation2 [shape = 'f32[2,18,128]{2,1,0:T(8,128)}', space=vmem, size = 0x6000, scoped, tag = 'scratch operand']
  #allocation3 [shape = 'f32[2,18,128]{2,1,0:T(8,128)}', space=vmem, size = 0x6000, scoped, tag = 'scratch operand']
  %s0 = inlined_call_operand.hbm [shape: f32[2,16,128], index: 0, kind: input, shape index: {}]
  %s1 = inlined_call_operand.hbm [shape: f32[3,128,128], index: 1, kind: input, shape index: {}]
  %s2 = inlined_call_operand.vmem [shape: f32[1,128], index: 2, kind: input, shape index: {}]
  %s3 = inlined_call_operand.vmem [shape: f32[1,128], index: 3, kind: input, shape index: {}]
  %s4 = inlined_call_operand.hbm [shape: f32[3,128,128], index: 4, kind: input, shape index: {}]
  %s5 = inlined_call_operand.vmem [shape: f32[1,128], index: 5, kind: input, shape index: {}]
  %s6 = inlined_call_operand.vmem [shape: f32[1,128], index: 6, kind: input, shape index: {}]
  %s7 = inlined_call_operand.hbm [shape: f32[128,128], index: 7, kind: input, shape index: {}]
  %s8 = inlined_call_operand.vmem [shape: f32[1,128], index: 8, kind: input, shape index: {}]
  %s9 = inlined_call_operand.hbm [shape: f32[128,128], index: 9, kind: input, shape index: {}]
  %s10 = inlined_call_operand.hbm [shape: f32[2,16,128], index: 10, kind: output, shape index: {}]
  %s11 = sld [smem:[#allocation0]]
  $region70: #{tpu_custom_call.1} parent=0
    _
  %s13 = ssub.s32 1, %s11
  %s14 = scalar_select 0, %s13, %s11
  $region1: #{tpu_custom_call.1} parent=0
    #allocation4 [shape = 'u8[16384]{0}', space=vmem, size = 0x4000, scoped, tag = 'input window, operand 0, single buffered']
    #allocation5 [shape = 's32[1]{0}', space=sflag, size = 0x4, scoped, tag = 'scoped memory for tpu_custom_call.1']
    #allocation6 [shape = 's32[1]{0}', space=sflag, size = 0x4, scoped, tag = 'scoped memory for tpu_custom_call.1']
    #allocation7 [shape = 'u8[196608]{0}', space=vmem, size = 0x30000, scoped, tag = 'input window, operand 1, single buffered']
    #allocation8 [shape = 's32[1]{0}', space=sflag, size = 0x4, scoped, tag = 'scoped memory for tpu_custom_call.1']
    #allocation9 [shape = 'u8[196608]{0}', space=vmem, size = 0x30000, scoped, tag = 'input window, operand 4, single buffered']
    #allocation10 [shape = 'u8[65536]{0}', space=vmem, size = 0x10000, scoped, tag = 'input window, operand 7, single buffered']
    #allocation11 [shape = 's32[1]{0}', space=sflag, size = 0x4, scoped, tag = 'scoped memory for tpu_custom_call.1']
    #allocation12 [shape = 'u8[65536]{0}', space=vmem, size = 0x10000, scoped, tag = 'input window, operand 9, single buffered']
    #allocation13 [shape = 'u8[16384]{0}', space=vmem, size = 0x4000, scoped, tag = 'output window, operand 0, single buffered']
    %15 = vsyncpa [#allocation5], 0
    %16 = vsyncpa [#allocation8], 0
    %17 = vsyncpa [#allocation11], 0
    %18 = vsyncpa [#allocation6], 0
    // Predicated region
    $region2: #{tpu_custom_call.1} parent=1 // pred_check
      _
    $region3: #{tpu_custom_call.1} parent=1 // pred_check_branch
      %20 = sbr.rel (0) target = $region5
    $region4: #{tpu_custom_call.1} parent=1 // pred_region
      %s22 = ssub.s32 512, 512
      %23 = vsyncadd [#allocation5], %s22
      %s24 = sshll.u32 [#allocation4], 4
      %s25 = int_to_ptr.vmem [resolvable:$true] %s24
      %30 = dma.hbm_to_vmem [thread:$0]  %s0, 512, %s25, [#allocation5], 128, 128, 8
    $region5: #{tpu_custom_call.1} parent=1 // pred_fallthru
      _
    // Predicated region
    $region6: #{tpu_custom_call.1} parent=1 // pred_check
      _
    $region7: #{tpu_custom_call.1} parent=1 // pred_check_branch
      %32 = sbr.rel (0) target = $region9
    $region8: #{tpu_custom_call.1} parent=1 // pred_region
      %s34 = ssub.s32 6144, 6144
      %35 = vsyncadd [#allocation8], %s34
      %s36 = sshll.u32 [#allocation7], 4
      %s37 = int_to_ptr.vmem [resolvable:$true] %s36
      %42 = dma.hbm_to_vmem [thread:$0]  %s1, 6144, %s37, [#allocation8], 128, 128, 8
    $region9: #{tpu_custom_call.1} parent=1 // pred_fallthru
      _
    // Predicated region
    $region10: #{tpu_custom_call.1} parent=1 // pred_check
      _
    $region11: #{tpu_custom_call.1} parent=1 // pred_check_branch
      %44 = sbr.rel (0) target = $region13
    $region12: #{tpu_custom_call.1} parent=1 // pred_region
      _
    $region13: #{tpu_custom_call.1} parent=1 // pred_fallthru
      _
    // Predicated region
    $region14: #{tpu_custom_call.1} parent=1 // pred_check
      _
    $region15: #{tpu_custom_call.1} parent=1 // pred_check_branch
      %46 = sbr.rel (0) target = $region17
    $region16: #{tpu_custom_call.1} parent=1 // pred_region
      _
    $region17: #{tpu_custom_call.1} parent=1 // pred_fallthru
      _
    // Predicated region
    $region18: #{tpu_custom_call.1} parent=1 // pred_check
      _
    $region19: #{tpu_custom_call.1} parent=1 // pred_check_branch
      %48 = sbr.rel (0) target = $region21
    $region20: #{tpu_custom_call.1} parent=1 // pred_region
      %s50 = ssub.s32 6144, 6144
      %51 = vsyncadd [#allocation8], %s50
      %s52 = sshll.u32 [#allocation9], 4
      %s53 = int_to_ptr.vmem [resolvable:$true] %s52
      %58 = dma.hbm_to_vmem [thread:$0]  %s4, 6144, %s53, [#allocation8], 128, 128, 8
    $region21: #{tpu_custom_call.1} parent=1 // pred_fallthru
      _
    // Predicated region
    $region22: #{tpu_custom_call.1} parent=1 // pred_check
      _
    $region23: #{tpu_custom_call.1} parent=1 // pred_check_branch
      %60 = sbr.rel (0) target = $region25
    $region24: #{tpu_custom_call.1} parent=1 // pred_region
      _
    $region25: #{tpu_custom_call.1} parent=1 // pred_fallthru
      _
    // Predicated region
    $region26: #{tpu_custom_call.1} parent=1 // pred_check
      _
    $region27: #{tpu_custom_call.1} parent=1 // pred_check_branch
      %62 = sbr.rel (0) target = $region29
    $region28: #{tpu_custom_call.1} parent=1 // pred_region
      _
    $region29: #{tpu_custom_call.1} parent=1 // pred_fallthru
      _
    // Predicated region
    $region30: #{tpu_custom_call.1} parent=1 // pred_check
      _
    $region31: #{tpu_custom_call.1} parent=1 // pred_check_branch
      %64 = sbr.rel (0) target = $region33
    $region32: #{tpu_custom_call.1} parent=1 // pred_region
      %s66 = ssub.s32 2048, 2048
      %67 = vsyncadd [#allocation11], %s66
      %s68 = sshll.u32 [#allocation10], 4
      %s69 = int_to_ptr.vmem [resolvable:$true] %s68
      %74 = dma.hbm_to_vmem [thread:$0]  %s7, 2048, %s69, [#allocation11], 128, 128, 8
    $region33: #{tpu_custom_call.1} parent=1 // pred_fallthru
      _
    // Predicated region
    $region34: #{tpu_custom_call.1} parent=1 // pred_check
      _
    $region35: #{tpu_custom_call.1} parent=1 // pred_check_branch
      %76 = sbr.rel (0) target = $region37
    $region36: #{tpu_custom_call.1} parent=1 // pred_region
      _
    $region37: #{tpu_custom_call.1} parent=1 // pred_fallthru
      _
    // Predicated region
    $region38: #{tpu_custom_call.1} parent=1 // pred_check
      _
    $region39: #{tpu_custom_call.1} parent=1 // pred_check_branch
      %78 = sbr.rel (0) target = $region41
    $region40: #{tpu_custom_call.1} parent=1 // pred_region
      %s80 = ssub.s32 2048, 2048
      %81 = vsyncadd [#allocation11], %s80
      %s82 = sshll.u32 [#allocation12], 4
      %s83 = int_to_ptr.vmem [resolvable:$true] %s82
      %88 = dma.hbm_to_vmem [thread:$0]  %s9, 2048, %s83, [#allocation11], 128, 128, 8
    $region41: #{tpu_custom_call.1} parent=1 // pred_fallthru
      _
    // Predicated region
    $region42: #{tpu_custom_call.1} parent=1 // pred_check
      _
    $region43: #{tpu_custom_call.1} parent=1 // pred_check_branch
      %90 = sbr.rel (0) target = $region45
    $region44: #{tpu_custom_call.1} parent=1 // pred_region
      %91 = dma.done [#allocation5], 512
    $region45: #{tpu_custom_call.1} parent=1 // pred_fallthru
      _
    // Predicated region
    $region46: #{tpu_custom_call.1} parent=1 // pred_check
      _
    $region47: #{tpu_custom_call.1} parent=1 // pred_check_branch
      %93 = sbr.rel (0) target = $region49
    $region48: #{tpu_custom_call.1} parent=1 // pred_region
      %94 = dma.done [#allocation8], 6144
    $region49: #{tpu_custom_call.1} parent=1 // pred_fallthru
      _
    // Predicated region
    $region50: #{tpu_custom_call.1} parent=1 // pred_check
      _
    $region51: #{tpu_custom_call.1} parent=1 // pred_check_branch
      %96 = sbr.rel (0) target = $region53
    $region52: #{tpu_custom_call.1} parent=1 // pred_region
      %97 = dma.done [#allocation8], 6144
    $region53: #{tpu_custom_call.1} parent=1 // pred_fallthru
      _
    // Predicated region
    $region54: #{tpu_custom_call.1} parent=1 // pred_check
      _
    $region55: #{tpu_custom_call.1} parent=1 // pred_check_branch
      %99 = sbr.rel (0) target = $region57
    $region56: #{tpu_custom_call.1} parent=1 // pred_region
      %100 = dma.done [#allocation11], 2048
    $region57: #{tpu_custom_call.1} parent=1 // pred_fallthru
      _
    // Predicated region
    $region58: #{tpu_custom_call.1} parent=1 // pred_check
      _
    $region59: #{tpu_custom_call.1} parent=1 // pred_check_branch
      %102 = sbr.rel (0) target = $region61
    $region60: #{tpu_custom_call.1} parent=1 // pred_region
      %103 = dma.done [#allocation11], 2048
    $region61: #{tpu_custom_call.1} parent=1 // pred_fallthru
      _
    %v104 = vld [vmem:[#allocation12] sm:$0xff]
    %v105 = vld [vmem:[#allocation12 + $0x8] sm:$0xff]
    %v106 = vld [vmem:[#allocation12 + $0x10] sm:$0xff]
    %v107 = vld [vmem:[#allocation12 + $0x18] sm:$0xff]
    %v108 = vld [vmem:[#allocation12 + $0x20] sm:$0xff]
    %v109 = vld [vmem:[#allocation12 + $0x28] sm:$0xff]
    %v110 = vld [vmem:[#allocation12 + $0x30] sm:$0xff]
    %v111 = vld [vmem:[#allocation12 + $0x38] sm:$0xff]
    %v112 = vld [vmem:[#allocation12 + $0x40] sm:$0xff]
    %v113 = vld [vmem:[#allocation12 + $0x48] sm:$0xff]
    %v114 = vld [vmem:[#allocation12 + $0x50] sm:$0xff]
    %v115 = vld [vmem:[#allocation12 + $0x58] sm:$0xff]
    %v116 = vld [vmem:[#allocation12 + $0x60] sm:$0xff]
    %v117 = vld [vmem:[#allocation12 + $0x68] sm:$0xff]
    %v118 = vld [vmem:[#allocation12 + $0x70] sm:$0xff]
    %v119 = vld [vmem:[#allocation12 + $0x78] sm:$0xff]
    %120 = vst [vmem:[#allocation2] sm:$0x1] 0.0
    %121 = vst [vmem:[#allocation2 + $0x18] sm:$0x1] 0.0
    %122 = vst [vmem:[#allocation2 + $0x11] sm:$0x1] 0.0
    %123 = vst [vmem:[#allocation2 + $0x29] sm:$0x1] 0.0
    %v124 = vld [vmem:[#allocation4] sm:$0xff]
    %v125 = vld [vmem:[#allocation4 + $0x8] sm:$0xff]
    %v126 = vld [vmem:[#allocation4 + $0x10] sm:$0xff]
    %v127 = vld [vmem:[#allocation4 + $0x18] sm:$0xff]
    %128 = vst [vmem:[#allocation2 + $0x1] sm:$0xff] %v124
    %129 = vst [vmem:[#allocation2 + $0x9] sm:$0xff] %v125
    %130 = vst [vmem:[#allocation2 + $0x19] sm:$0xff] %v126
    %131 = vst [vmem:[#allocation2 + $0x21] sm:$0xff] %v127
    %v132 = vld [vmem:[#allocation4] sm:$0xff]
    %v133 = vld [vmem:[#allocation4 + $0x8] sm:$0xff]
    %v134 = vld [vmem:[#allocation4 + $0x10] sm:$0xff]
    %v135 = vld [vmem:[#allocation4 + $0x18] sm:$0xff]
    %v136 = vld [vmem:[#allocation2] sm:$0xff]
    %v137 = vld [vmem:[#allocation2 + $0x8] sm:$0xff]
    %v138 = vld [vmem:[#allocation2 + $0x18] sm:$0xff]
    %v139 = vld [vmem:[#allocation2 + $0x20] sm:$0xff]
    %v140 = vld [vmem:[#allocation7] sm:$0xff]
    %v141 = vld [vmem:[#allocation7 + $0x8] sm:$0xff]
    %v142 = vld [vmem:[#allocation7 + $0x10] sm:$0xff]
    %v143 = vld [vmem:[#allocation7 + $0x18] sm:$0xff]
    %v144 = vld [vmem:[#allocation7 + $0x20] sm:$0xff]
    %v145 = vld [vmem:[#allocation7 + $0x28] sm:$0xff]
    %v146 = vld [vmem:[#allocation7 + $0x30] sm:$0xff]
    %v147 = vld [vmem:[#allocation7 + $0x38] sm:$0xff]
    %v148 = vld [vmem:[#allocation7 + $0x40] sm:$0xff]
    %v149 = vld [vmem:[#allocation7 + $0x48] sm:$0xff]
    %v150 = vld [vmem:[#allocation7 + $0x50] sm:$0xff]
    %v151 = vld [vmem:[#allocation7 + $0x58] sm:$0xff]
    %v152 = vld [vmem:[#allocation7 + $0x60] sm:$0xff]
    %v153 = vld [vmem:[#allocation7 + $0x68] sm:$0xff]
    %v154 = vld [vmem:[#allocation7 + $0x70] sm:$0xff]
    %v155 = vld [vmem:[#allocation7 + $0x78] sm:$0xff]
    %s156 = scalar_lea.vmem [#allocation7], 128
    %v157 = vld [vmem:[%s156] sm:$0xff]
    %v158 = vld [vmem:[%s156 + $0x8] sm:$0xff]
    %v159 = vld [vmem:[%s156 + $0x10] sm:$0xff]
    %v160 = vld [vmem:[%s156 + $0x18] sm:$0xff]
    %v161 = vld [vmem:[%s156 + $0x20] sm:$0xff]
    %v162 = vld [vmem:[%s156 + $0x28] sm:$0xff]
    %v163 = vld [vmem:[%s156 + $0x30] sm:$0xff]
    %v164 = vld [vmem:[%s156 + $0x38] sm:$0xff]
    %v165 = vld [vmem:[%s156 + $0x40] sm:$0xff]
    %v166 = vld [vmem:[%s156 + $0x48] sm:$0xff]
    %v167 = vld [vmem:[%s156 + $0x50] sm:$0xff]
    %v168 = vld [vmem:[%s156 + $0x58] sm:$0xff]
    %v169 = vld [vmem:[%s156 + $0x60] sm:$0xff]
    %v170 = vld [vmem:[%s156 + $0x68] sm:$0xff]
    %v171 = vld [vmem:[%s156 + $0x70] sm:$0xff]
    %v172 = vld [vmem:[%s156 + $0x78] sm:$0xff]
    %173 = vmatprep.subr.mxu0 0.0
    %174 = vmatpush1.msra.mxu0 %v172
    %175 = vmatprep.subr.mxu0 0.0
    %176 = vmatpush1.msra.mxu0 %v171
    %177 = vmatprep.subr.mxu0 0.0
    %178 = vmatpush1.msra.mxu0 %v170
    %179 = vmatprep.subr.mxu0 0.0
    %180 = vmatpush1.msra.mxu0 %v169
    %181 = vmatprep.subr.mxu0 0.0
    %182 = vmatpush1.msra.mxu0 %v168
    %183 = vmatprep.subr.mxu0 0.0
    %184 = vmatpush1.msra.mxu0 %v167
    %185 = vmatprep.subr.mxu0 0.0
    %186 = vmatpush1.msra.mxu0 %v166
    %187 = vmatprep.subr.mxu0 0.0
    %188 = vmatpush1.msra.mxu0 %v165
    %189 = vmatprep.subr.mxu0 0.0
    %190 = vmatpush1.msra.mxu0 %v164
    %191 = vmatprep.subr.mxu0 0.0
    %192 = vmatpush1.msra.mxu0 %v163
    %193 = vmatprep.subr.mxu0 0.0
    %194 = vmatpush1.msra.mxu0 %v162
    %195 = vmatprep.subr.mxu0 0.0
    %196 = vmatpush1.msra.mxu0 %v161
    %197 = vmatprep.subr.mxu0 0.0
    %198 = vmatpush1.msra.mxu0 %v160
    %199 = vmatprep.subr.mxu0 0.0
    %200 = vmatpush1.msra.mxu0 %v159
    %201 = vmatprep.subr.mxu0 0.0
    %202 = vmatpush1.msra.mxu0 %v158
    %203 = vmatprep.subr.mxu0 0.0
    %204 = vmatpush1.msra.mxu0 %v157
    %205 = vmatprep.subr.mxu0 0.0
    %206 = vmatpush2.msra.mxu0 0.0
    %207 = vmatprep.subr.mxu0 0.0
    %208 = vmatpush2.msra.mxu0 0.0
    %209 = vmatprep.subr.mxu0 0.0
    %210 = vmatpush2.msra.mxu0 0.0
    %211 = vmatprep.subr.mxu0 0.0
    %212 = vmatpush2.msra.mxu0 0.0
    %213 = vmatprep.subr.mxu0 0.0
    %214 = vmatpush2.msra.mxu0 0.0
    %215 = vmatprep.subr.mxu0 0.0
    %216 = vmatpush2.msra.mxu0 0.0
    %217 = vmatprep.subr.mxu0 0.0
    %218 = vmatpush2.msra.mxu0 0.0
    %219 = vmatprep.subr.mxu0 0.0
    %220 = vmatpush2.msra.mxu0 0.0
    %221 = vmatprep.subr.mxu0 0.0
    %222 = vmatpush2.msra.mxu0 0.0
    %223 = vmatprep.subr.mxu0 0.0
    %224 = vmatpush2.msra.mxu0 0.0
    %225 = vmatprep.subr.mxu0 0.0
    %226 = vmatpush2.msra.mxu0 0.0
    %227 = vmatprep.subr.mxu0 0.0
    %228 = vmatpush2.msra.mxu0 0.0
    %229 = vmatprep.subr.mxu0 0.0
    %230 = vmatpush2.msra.mxu0 0.0
    %231 = vmatprep.subr.mxu0 0.0
    %232 = vmatpush2.msra.mxu0 0.0
    %233 = vmatprep.subr.mxu0 0.0
    %234 = vmatpush2.msra.mxu0 0.0
    %235 = vmatprep.subr.mxu0 0.0
    %236 = vmatpush2.msra.mxu0 0.0
    %237 = vmatprep.mubr.f32.mxu0 0.0
    %238 = vmatmul.mubr.f32.gmra.mxu0 %v132
    %v239 = vpop.f32.mrf.mxu0
    %v240 = vadd.f32 0.0, %v239
    %v241 = vpop.f32.mrf.mxu0
    %242 = vmatprep.mubr.f32.mxu0 0.0
    %243 = vmatmul.mubr.f32.gmra.mxu0 %v133
    %v244 = vpop.f32.mrf.mxu0
    %v245 = vadd.f32 0.0, %v244
    %v246 = vpop.f32.mrf.mxu0
    %247 = vmatprep.mubr.f32.mxu0 0.0
    %248 = vmatmul.mubr.f32.gmra.mxu0 %v134
    %v249 = vpop.f32.mrf.mxu0
    %v250 = vadd.f32 0.0, %v249
    %v251 = vpop.f32.mrf.mxu0
    %252 = vmatprep.mubr.f32.mxu0 0.0
    %253 = vmatmul.mubr.f32.gmra.mxu0 %v135
    %v254 = vpop.f32.mrf.mxu0
    %v255 = vadd.f32 0.0, %v254
    %v256 = vpop.f32.mrf.mxu0
    %257 = vdwg.mxu0
    %258 = vmatprep.subr.mxu0 0.0
    %259 = vmatpush1.msra.mxu0 %v155
    %260 = vmatprep.subr.mxu0 0.0
    %261 = vmatpush1.msra.mxu0 %v154
    %262 = vmatprep.subr.mxu0 0.0
    %263 = vmatpush1.msra.mxu0 %v153
    %264 = vmatprep.subr.mxu0 0.0
    %265 = vmatpush1.msra.mxu0 %v152
    %266 = vmatprep.subr.mxu0 0.0
    %267 = vmatpush1.msra.mxu0 %v151
    %268 = vmatprep.subr.mxu0 0.0
    %269 = vmatpush1.msra.mxu0 %v150
    %270 = vmatprep.subr.mxu0 0.0
    %271 = vmatpush1.msra.mxu0 %v149
    %272 = vmatprep.subr.mxu0 0.0
    %273 = vmatpush1.msra.mxu0 %v148
    %274 = vmatprep.subr.mxu0 0.0
    %275 = vmatpush1.msra.mxu0 %v147
    %276 = vmatprep.subr.mxu0 0.0
    %277 = vmatpush1.msra.mxu0 %v146
    %278 = vmatprep.subr.mxu0 0.0
    %279 = vmatpush1.msra.mxu0 %v145
    %280 = vmatprep.subr.mxu0 0.0
    %281 = vmatpush1.msra.mxu0 %v144
    %282 = vmatprep.subr.mxu0 0.0
    %283 = vmatpush1.msra.mxu0 %v143
    %284 = vmatprep.subr.mxu0 0.0
    %285 = vmatpush1.msra.mxu0 %v142
    %286 = vmatprep.subr.mxu0 0.0
    %287 = vmatpush1.msra.mxu0 %v141
    %288 = vmatprep.subr.mxu0 0.0
    %289 = vmatpush1.msra.mxu0 %v140
    %290 = vmatprep.subr.mxu0 0.0
    %291 = vmatpush2.msra.mxu0 0.0
    %292 = vmatprep.subr.mxu0 0.0
    %293 = vmatpush2.msra.mxu0 0.0
    %294 = vmatprep.subr.mxu0 0.0
    %295 = vmatpush2.msra.mxu0 0.0
    %296 = vmatprep.subr.mxu0 0.0
    %297 = vmatpush2.msra.mxu0 0.0
    %298 = vmatprep.subr.mxu0 0.0
    %299 = vmatpush2.msra.mxu0 0.0
    %300 = vmatprep.subr.mxu0 0.0
    %301 = vmatpush2.msra.mxu0 0.0
    %302 = vmatprep.subr.mxu0 0.0
    %303 = vmatpush2.msra.mxu0 0.0
    %304 = vmatprep.subr.mxu0 0.0
    %305 = vmatpush2.msra.mxu0 0.0
    %306 = vmatprep.subr.mxu0 0.0
    %307 = vmatpush2.msra.mxu0 0.0
    %308 = vmatprep.subr.mxu0 0.0
    %309 = vmatpush2.msra.mxu0 0.0
    %310 = vmatprep.subr.mxu0 0.0
    %311 = vmatpush2.msra.mxu0 0.0
    %312 = vmatprep.subr.mxu0 0.0
    %313 = vmatpush2.msra.mxu0 0.0
    %314 = vmatprep.subr.mxu0 0.0
    %315 = vmatpush2.msra.mxu0 0.0
    %316 = vmatprep.subr.mxu0 0.0
    %317 = vmatpush2.msra.mxu0 0.0
    %318 = vmatprep.subr.mxu0 0.0
    %319 = vmatpush2.msra.mxu0 0.0
    %320 = vmatprep.subr.mxu0 0.0
    %321 = vmatpush2.msra.mxu0 0.0
    %322 = vmatprep.mubr.f32.mxu0 0.0
    %323 = vmatmul.mubr.f32.gmra.mxu0 %v136
    %v324 = vpop.f32.mrf.mxu0
    %v325 = vadd.f32 %v240, %v324
    %v326 = vpop.f32.mrf.mxu0
    %327 = vmatprep.mubr.f32.mxu0 0.0
    %328 = vmatmul.mubr.f32.gmra.mxu0 %v137
    %v329 = vpop.f32.mrf.mxu0
    %v330 = vadd.f32 %v245, %v329
    %v331 = vpop.f32.mrf.mxu0
    %332 = vmatprep.mubr.f32.mxu0 0.0
    %333 = vmatmul.mubr.f32.gmra.mxu0 %v138
    %v334 = vpop.f32.mrf.mxu0
    %v335 = vadd.f32 %v250, %v334
    %v336 = vpop.f32.mrf.mxu0
    %337 = vmatprep.mubr.f32.mxu0 0.0
    %338 = vmatmul.mubr.f32.gmra.mxu0 %v139
    %v339 = vpop.f32.mrf.mxu0
    %v340 = vadd.f32 %v255, %v339
    %v341 = vpop.f32.mrf.mxu0
    %342 = vdwg.mxu0
    %v343 = vld [vmem:[#allocation2 + $0x2] sm:$0xff]
    %v344 = vld [vmem:[#allocation2 + $0xa] sm:$0xff]
    %v345 = vld [vmem:[#allocation2 + $0x1a] sm:$0xff]
    %v346 = vld [vmem:[#allocation2 + $0x22] sm:$0xff]
    %s347 = scalar_lea.vmem [#allocation7], 256
    %v348 = vld [vmem:[%s347] sm:$0xff]
    %v349 = vld [vmem:[%s347 + $0x8] sm:$0xff]
    %v350 = vld [vmem:[%s347 + $0x10] sm:$0xff]
    %v351 = vld [vmem:[%s347 + $0x18] sm:$0xff]
    %v352 = vld [vmem:[%s347 + $0x20] sm:$0xff]
    %v353 = vld [vmem:[%s347 + $0x28] sm:$0xff]
    %v354 = vld [vmem:[%s347 + $0x30] sm:$0xff]
    %v355 = vld [vmem:[%s347 + $0x38] sm:$0xff]
    %v356 = vld [vmem:[%s347 + $0x40] sm:$0xff]
    %v357 = vld [vmem:[%s347 + $0x48] sm:$0xff]
    %v358 = vld [vmem:[%s347 + $0x50] sm:$0xff]
    %v359 = vld [vmem:[%s347 + $0x58] sm:$0xff]
    %v360 = vld [vmem:[%s347 + $0x60] sm:$0xff]
    %v361 = vld [vmem:[%s347 + $0x68] sm:$0xff]
    %v362 = vld [vmem:[%s347 + $0x70] sm:$0xff]
    %v363 = vld [vmem:[%s347 + $0x78] sm:$0xff]
    %364 = vmatprep.subr.mxu0 0.0
    %365 = vmatpush1.msra.mxu0 %v363
    %366 = vmatprep.subr.mxu0 0.0
    %367 = vmatpush1.msra.mxu0 %v362
    %368 = vmatprep.subr.mxu0 0.0
    %369 = vmatpush1.msra.mxu0 %v361
    %370 = vmatprep.subr.mxu0 0.0
    %371 = vmatpush1.msra.mxu0 %v360
    %372 = vmatprep.subr.mxu0 0.0
    %373 = vmatpush1.msra.mxu0 %v359
    %374 = vmatprep.subr.mxu0 0.0
    %375 = vmatpush1.msra.mxu0 %v358
    %376 = vmatprep.subr.mxu0 0.0
    %377 = vmatpush1.msra.mxu0 %v357
    %378 = vmatprep.subr.mxu0 0.0
    %379 = vmatpush1.msra.mxu0 %v356
    %380 = vmatprep.subr.mxu0 0.0
    %381 = vmatpush1.msra.mxu0 %v355
    %382 = vmatprep.subr.mxu0 0.0
    %383 = vmatpush1.msra.mxu0 %v354
    %384 = vmatprep.subr.mxu0 0.0
    %385 = vmatpush1.msra.mxu0 %v353
    %386 = vmatprep.subr.mxu0 0.0
    %387 = vmatpush1.msra.mxu0 %v352
    %388 = vmatprep.subr.mxu0 0.0
    %389 = vmatpush1.msra.mxu0 %v351
    %390 = vmatprep.subr.mxu0 0.0
    %391 = vmatpush1.msra.mxu0 %v350
    %392 = vmatprep.subr.mxu0 0.0
    %393 = vmatpush1.msra.mxu0 %v349
    %394 = vmatprep.subr.mxu0 0.0
    %395 = vmatpush1.msra.mxu0 %v348
    %396 = vmatprep.subr.mxu0 0.0
    %397 = vmatpush2.msra.mxu0 0.0
    %398 = vmatprep.subr.mxu0 0.0
    %399 = vmatpush2.msra.mxu0 0.0
    %400 = vmatprep.subr.mxu0 0.0
    %401 = vmatpush2.msra.mxu0 0.0
    %402 = vmatprep.subr.mxu0 0.0
    %403 = vmatpush2.msra.mxu0 0.0
    %404 = vmatprep.subr.mxu0 0.0
    %405 = vmatpush2.msra.mxu0 0.0
    %406 = vmatprep.subr.mxu0 0.0
    %407 = vmatpush2.msra.mxu0 0.0
    %408 = vmatprep.subr.mxu0 0.0
    %409 = vmatpush2.msra.mxu0 0.0
    %410 = vmatprep.subr.mxu0 0.0
    %411 = vmatpush2.msra.mxu0 0.0
    %412 = vmatprep.subr.mxu0 0.0
    %413 = vmatpush2.msra.mxu0 0.0
    %414 = vmatprep.subr.mxu0 0.0
    %415 = vmatpush2.msra.mxu0 0.0
    %416 = vmatprep.subr.mxu0 0.0
    %417 = vmatpush2.msra.mxu0 0.0
    %418 = vmatprep.subr.mxu0 0.0
    %419 = vmatpush2.msra.mxu0 0.0
    %420 = vmatprep.subr.mxu0 0.0
    %421 = vmatpush2.msra.mxu0 0.0
    %422 = vmatprep.subr.mxu0 0.0
    %423 = vmatpush2.msra.mxu0 0.0
    %424 = vmatprep.subr.mxu0 0.0
    %425 = vmatpush2.msra.mxu0 0.0
    %426 = vmatprep.subr.mxu0 0.0
    %427 = vmatpush2.msra.mxu0 0.0
    %428 = vmatprep.mubr.f32.mxu0 0.0
    %429 = vmatmul.mubr.f32.gmra.mxu0 %v343
    %v430 = vpop.f32.mrf.mxu0
    %v431 = vadd.f32 0.0, %v430
    %v432 = vpop.f32.mrf.mxu0
    %433 = vmatprep.mubr.f32.mxu0 0.0
    %434 = vmatmul.mubr.f32.gmra.mxu0 %v344
    %v435 = vpop.f32.mrf.mxu0
    %v436 = vadd.f32 0.0, %v435
    %v437 = vpop.f32.mrf.mxu0
    %438 = vmatprep.mubr.f32.mxu0 0.0
    %439 = vmatmul.mubr.f32.gmra.mxu0 %v345
    %v440 = vpop.f32.mrf.mxu0
    %v441 = vadd.f32 0.0, %v440
    %v442 = vpop.f32.mrf.mxu0
    %443 = vmatprep.mubr.f32.mxu0 0.0
    %444 = vmatmul.mubr.f32.gmra.mxu0 %v346
    %v445 = vpop.f32.mrf.mxu0
    %v446 = vadd.f32 0.0, %v445
    %v447 = vpop.f32.mrf.mxu0
    %448 = vdwg.mxu0
    %v449 = vadd.f32 %v325, %v431
    %v450 = vadd.f32 %v330, %v436
    %v451 = vadd.f32 %v335, %v441
    %v452 = vadd.f32 %v340, %v446
    %v453 = vld [vmem:[%s2] sm:$0x1]
    %v454 = vld [vmem:[%s3] sm:$0x1]
    %v455 = vadd.f32 %v449, %v450
    %v456 = vadd.f32 %v455, %v451
    %v457 = vadd.f32 %v456, %v452
    %v458 = vrot.slane %v457, 4
    %v459 = vadd.f32 %v457, %v458
    %v460 = vrot.slane %v459, 2
    %v461 = vadd.f32 %v459, %v460
    %v462 = vrot.slane %v461, 1
    %v463 = vadd.f32 %v461, %v462
    %v464 = vmul.f32 %v449, %v449
    %v465 = vmul.f32 %v450, %v450
    %v466 = vmul.f32 %v451, %v451
    %v467 = vmul.f32 %v452, %v452
    %v468 = vadd.f32 %v464, %v465
    %v469 = vadd.f32 %v468, %v466
    %v470 = vadd.f32 %v469, %v467
    %v471 = vrot.slane %v470, 4
    %v472 = vadd.f32 %v470, %v471
    %v473 = vrot.slane %v472, 2
    %v474 = vadd.f32 %v472, %v473
    %v475 = vrot.slane %v474, 1
    %v476 = vadd.f32 %v474, %v475
    %477 = vmatprep.subr.mxu0 0.0
    %478 = vmatpush1.msra.mxu0 %v119
    %479 = vmatprep.subr.mxu0 0.0
    %480 = vmatpush1.msra.mxu0 %v118
    %481 = vmatprep.subr.mxu0 0.0
    %482 = vmatpush1.msra.mxu0 %v117
    %483 = vmatprep.subr.mxu0 0.0
    %484 = vmatpush1.msra.mxu0 %v116
    %485 = vmatprep.subr.mxu0 0.0
    %486 = vmatpush1.msra.mxu0 %v115
    %487 = vmatprep.subr.mxu0 0.0
    %488 = vmatpush1.msra.mxu0 %v114
    %489 = vmatprep.subr.mxu0 0.0
    %490 = vmatpush1.msra.mxu0 %v113
    %491 = vmatprep.subr.mxu0 0.0
    %492 = vmatpush1.msra.mxu0 %v112
    %493 = vmatprep.subr.mxu0 0.0
    %494 = vmatpush1.msra.mxu0 %v111
    %495 = vmatprep.subr.mxu0 0.0
    %496 = vmatpush1.msra.mxu0 %v110
    %497 = vmatprep.subr.mxu0 0.0
    %498 = vmatpush1.msra.mxu0 %v109
    %499 = vmatprep.subr.mxu0 0.0
    %500 = vmatpush1.msra.mxu0 %v108
    %501 = vmatprep.subr.mxu0 0.0
    %502 = vmatpush1.msra.mxu0 %v107
    %503 = vmatprep.subr.mxu0 0.0
    %504 = vmatpush1.msra.mxu0 %v106
    %505 = vmatprep.subr.mxu0 0.0
    %506 = vmatpush1.msra.mxu0 %v105
    %507 = vmatprep.subr.mxu0 0.0
    %508 = vmatpush1.msra.mxu0 %v104
    %509 = vmatprep.subr.mxu0 0.0
    %510 = vmatpush2.msra.mxu0 0.0
    %511 = vmatprep.subr.mxu0 0.0
    %512 = vmatpush2.msra.mxu0 0.0
    %513 = vmatprep.subr.mxu0 0.0
    %514 = vmatpush2.msra.mxu0 0.0
    %515 = vmatprep.subr.mxu0 0.0
    %516 = vmatpush2.msra.mxu0 0.0
    %517 = vmatprep.subr.mxu0 0.0
    %518 = vmatpush2.msra.mxu0 0.0
    %519 = vmatprep.subr.mxu0 0.0
    %520 = vmatpush2.msra.mxu0 0.0
    %521 = vmatprep.subr.mxu0 0.0
    %522 = vmatpush2.msra.mxu0 0.0
    %523 = vmatprep.subr.mxu0 0.0
    %524 = vmatpush2.msra.mxu0 0.0
    %525 = vmatprep.subr.mxu0 0.0
    %526 = vmatpush2.msra.mxu0 0.0
    %527 = vmatprep.subr.mxu0 0.0
    %528 = vmatpush2.msra.mxu0 0.0
    %529 = vmatprep.subr.mxu0 0.0
    %530 = vmatpush2.msra.mxu0 0.0
    %531 = vmatprep.subr.mxu0 0.0
    %532 = vmatpush2.msra.mxu0 0.0
    %533 = vmatprep.subr.mxu0 0.0
    %534 = vmatpush2.msra.mxu0 0.0
    %535 = vmatprep.subr.mxu0 0.0
    %536 = vmatpush2.msra.mxu0 0.0
    %537 = vmatprep.subr.mxu0 0.0
    %538 = vmatpush2.msra.mxu0 0.0
    %539 = vmatprep.subr.mxu0 0.0
    %540 = vmatpush2.msra.mxu0 0.0
    %541 = vmatprep.mubr.f32.mxu0 0.0
    %542 = vmatmul.mubr.f32.gmra.mxu0 %v463
    %v543 = vpop.f32.mrf.mxu0
    %v544 = vadd.f32 0.0, %v543
    %v545 = vpop.f32.mrf.mxu0
    %546 = vdwg.mxu0
    %547 = vmatprep.subr.mxu0 0.0
    %548 = vmatpush1.msra.mxu0 %v119
    %549 = vmatprep.subr.mxu0 0.0
    %550 = vmatpush1.msra.mxu0 %v118
    %551 = vmatprep.subr.mxu0 0.0
    %552 = vmatpush1.msra.mxu0 %v117
    %553 = vmatprep.subr.mxu0 0.0
    %554 = vmatpush1.msra.mxu0 %v116
    %555 = vmatprep.subr.mxu0 0.0
    %556 = vmatpush1.msra.mxu0 %v115
    %557 = vmatprep.subr.mxu0 0.0
    %558 = vmatpush1.msra.mxu0 %v114
    %559 = vmatprep.subr.mxu0 0.0
    %560 = vmatpush1.msra.mxu0 %v113
    %561 = vmatprep.subr.mxu0 0.0
    %562 = vmatpush1.msra.mxu0 %v112
    %563 = vmatprep.subr.mxu0 0.0
    %564 = vmatpush1.msra.mxu0 %v111
    %565 = vmatprep.subr.mxu0 0.0
    %566 = vmatpush1.msra.mxu0 %v110
    %567 = vmatprep.subr.mxu0 0.0
    %568 = vmatpush1.msra.mxu0 %v109
    %569 = vmatprep.subr.mxu0 0.0
    %570 = vmatpush1.msra.mxu0 %v108
    %571 = vmatprep.subr.mxu0 0.0
    %572 = vmatpush1.msra.mxu0 %v107
    %573 = vmatprep.subr.mxu0 0.0
    %574 = vmatpush1.msra.mxu0 %v106
    %575 = vmatprep.subr.mxu0 0.0
    %576 = vmatpush1.msra.mxu0 %v105
    %577 = vmatprep.subr.mxu0 0.0
    %578 = vmatpush1.msra.mxu0 %v104
    %579 = vmatprep.subr.mxu0 0.0
    %580 = vmatpush2.msra.mxu0 0.0
    %581 = vmatprep.subr.mxu0 0.0
    %582 = vmatpush2.msra.mxu0 0.0
    %583 = vmatprep.subr.mxu0 0.0
    %584 = vmatpush2.msra.mxu0 0.0
    %585 = vmatprep.subr.mxu0 0.0
    %586 = vmatpush2.msra.mxu0 0.0
    %587 = vmatprep.subr.mxu0 0.0
    %588 = vmatpush2.msra.mxu0 0.0
    %589 = vmatprep.subr.mxu0 0.0
    %590 = vmatpush2.msra.mxu0 0.0
    %591 = vmatprep.subr.mxu0 0.0
    %592 = vmatpush2.msra.mxu0 0.0
    %593 = vmatprep.subr.mxu0 0.0
    %594 = vmatpush2.msra.mxu0 0.0
    %595 = vmatprep.subr.mxu0 0.0
    %596 = vmatpush2.msra.mxu0 0.0
    %597 = vmatprep.subr.mxu0 0.0
    %598 = vmatpush2.msra.mxu0 0.0
    %599 = vmatprep.subr.mxu0 0.0
    %600 = vmatpush2.msra.mxu0 0.0
    %601 = vmatprep.subr.mxu0 0.0
    %602 = vmatpush2.msra.mxu0 0.0
    %603 = vmatprep.subr.mxu0 0.0
    %604 = vmatpush2.msra.mxu0 0.0
    %605 = vmatprep.subr.mxu0 0.0
    %606 = vmatpush2.msra.mxu0 0.0
    %607 = vmatprep.subr.mxu0 0.0
    %608 = vmatpush2.msra.mxu0 0.0
    %609 = vmatprep.subr.mxu0 0.0
    %610 = vmatpush2.msra.mxu0 0.0
    %611 = vmatprep.mubr.f32.mxu0 0.0
    %612 = vmatmul.mubr.f32.gmra.mxu0 %v476
    %v613 = vpop.f32.mrf.mxu0
    %v614 = vadd.f32 0.0, %v613
    %v615 = vpop.f32.mrf.mxu0
    %616 = vdwg.mxu0
    %v617 = vmul.f32 %v544, %v544
    %v618 = vsub.f32 %v614, %v617
    %v619 = vmax.f32 %v618, 0.0
    %v620 = vadd.f32 %v619, 1e-05
    %v621 = vrsqrt.pop %v620
    %v622 = vmul.f32 %v453, %v621
    %v624 = vlaneseq
    %v625 = vshrl.u32 %v624, 7
    %v626 = vsub.s32 0, %v625
    %v627 = vrot.slane %v622, %v626
    %v629 = vmul.f32 %v449, %v627
    %v630 = vmul.f32 %v450, %v627
    %v631 = vmul.f32 %v451, %v627
    %v632 = vmul.f32 %v452, %v627
    %v633 = vmul.f32 %v544, %v622
    %v634 = vsub.f32 %v454, %v633
    %v636 = vlaneseq
    %v637 = vshrl.u32 %v636, 7
    %v638 = vsub.s32 0, %v637
    %v639 = vrot.slane %v634, %v638
    %v641 = vadd.f32 %v629, %v639
    %v642 = vadd.f32 %v630, %v639
    %v643 = vadd.f32 %v631, %v639
    %v644 = vadd.f32 %v632, %v639
    %v645 = vmax.f32 %v641, 0.0
    %v646 = vmax.f32 %v642, 0.0
    %v647 = vmax.f32 %v643, 0.0
    %v648 = vmax.f32 %v644, 0.0
    %649 = vst [vmem:[#allocation3] sm:$0x1] 0.0
    %650 = vst [vmem:[#allocation3 + $0x18] sm:$0x1] 0.0
    %651 = vst [vmem:[#allocation3 + $0x11] sm:$0x1] 0.0
    %652 = vst [vmem:[#allocation3 + $0x29] sm:$0x1] 0.0
    %653 = vst [vmem:[#allocation3 + $0x1] sm:$0xff] %v645
    %654 = vst [vmem:[#allocation3 + $0x9] sm:$0xff] %v646
    %655 = vst [vmem:[#allocation3 + $0x19] sm:$0xff] %v647
    %656 = vst [vmem:[#allocation3 + $0x21] sm:$0xff] %v648
    %v657 = vld [vmem:[#allocation3] sm:$0xff]
    %v658 = vld [vmem:[#allocation3 + $0x8] sm:$0xff]
    %v659 = vld [vmem:[#allocation3 + $0x18] sm:$0xff]
    %v660 = vld [vmem:[#allocation3 + $0x20] sm:$0xff]
    %v661 = vld [vmem:[#allocation9] sm:$0xff]
    %v662 = vld [vmem:[#allocation9 + $0x8] sm:$0xff]
    %v663 = vld [vmem:[#allocation9 + $0x10] sm:$0xff]
    %v664 = vld [vmem:[#allocation9 + $0x18] sm:$0xff]
    %v665 = vld [vmem:[#allocation9 + $0x20] sm:$0xff]
    %v666 = vld [vmem:[#allocation9 + $0x28] sm:$0xff]
    %v667 = vld [vmem:[#allocation9 + $0x30] sm:$0xff]
    %v668 = vld [vmem:[#allocation9 + $0x38] sm:$0xff]
    %v669 = vld [vmem:[#allocation9 + $0x40] sm:$0xff]
    %v670 = vld [vmem:[#allocation9 + $0x48] sm:$0xff]
    %v671 = vld [vmem:[#allocation9 + $0x50] sm:$0xff]
    %v672 = vld [vmem:[#allocation9 + $0x58] sm:$0xff]
    %v673 = vld [vmem:[#allocation9 + $0x60] sm:$0xff]
    %v674 = vld [vmem:[#allocation9 + $0x68] sm:$0xff]
    %v675 = vld [vmem:[#allocation9 + $0x70] sm:$0xff]
    %v676 = vld [vmem:[#allocation9 + $0x78] sm:$0xff]
    %s677 = scalar_lea.vmem [#allocation9], 128
    %v678 = vld [vmem:[%s677] sm:$0xff]
    %v679 = vld [vmem:[%s677 + $0x8] sm:$0xff]
    %v680 = vld [vmem:[%s677 + $0x10] sm:$0xff]
    %v681 = vld [vmem:[%s677 + $0x18] sm:$0xff]
    %v682 = vld [vmem:[%s677 + $0x20] sm:$0xff]
    %v683 = vld [vmem:[%s677 + $0x28] sm:$0xff]
    %v684 = vld [vmem:[%s677 + $0x30] sm:$0xff]
    %v685 = vld [vmem:[%s677 + $0x38] sm:$0xff]
    %v686 = vld [vmem:[%s677 + $0x40] sm:$0xff]
    %v687 = vld [vmem:[%s677 + $0x48] sm:$0xff]
    %v688 = vld [vmem:[%s677 + $0x50] sm:$0xff]
    %v689 = vld [vmem:[%s677 + $0x58] sm:$0xff]
    %v690 = vld [vmem:[%s677 + $0x60] sm:$0xff]
    %v691 = vld [vmem:[%s677 + $0x68] sm:$0xff]
    %v692 = vld [vmem:[%s677 + $0x70] sm:$0xff]
    %v693 = vld [vmem:[%s677 + $0x78] sm:$0xff]
    %694 = vmatprep.subr.mxu0 0.0
    %695 = vmatpush1.msra.mxu0 %v693
    %696 = vmatprep.subr.mxu0 0.0
    %697 = vmatpush1.msra.mxu0 %v692
    %698 = vmatprep.subr.mxu0 0.0
    %699 = vmatpush1.msra.mxu0 %v691
    %700 = vmatprep.subr.mxu0 0.0
    %701 = vmatpush1.msra.mxu0 %v690
    %702 = vmatprep.subr.mxu0 0.0
    %703 = vmatpush1.msra.mxu0 %v689
    %704 = vmatprep.subr.mxu0 0.0
    %705 = vmatpush1.msra.mxu0 %v688
    %706 = vmatprep.subr.mxu0 0.0
    %707 = vmatpush1.msra.mxu0 %v687
    %708 = vmatprep.subr.mxu0 0.0
    %709 = vmatpush1.msra.mxu0 %v686
    %710 = vmatprep.subr.mxu0 0.0
    %711 = vmatpush1.msra.mxu0 %v685
    %712 = vmatprep.subr.mxu0 0.0
    %713 = vmatpush1.msra.mxu0 %v684
    %714 = vmatprep.subr.mxu0 0.0
    %715 = vmatpush1.msra.mxu0 %v683
    %716 = vmatprep.subr.mxu0 0.0
    %717 = vmatpush1.msra.mxu0 %v682
    %718 = vmatprep.subr.mxu0 0.0
    %719 = vmatpush1.msra.mxu0 %v681
    %720 = vmatprep.subr.mxu0 0.0
    %721 = vmatpush1.msra.mxu0 %v680
    %722 = vmatprep.subr.mxu0 0.0
    %723 = vmatpush1.msra.mxu0 %v679
    %724 = vmatprep.subr.mxu0 0.0
    %725 = vmatpush1.msra.mxu0 %v678
    %726 = vmatprep.subr.mxu0 0.0
    %727 = vmatpush2.msra.mxu0 0.0
    %728 = vmatprep.subr.mxu0 0.0
    %729 = vmatpush2.msra.mxu0 0.0
    %730 = vmatprep.subr.mxu0 0.0
    %731 = vmatpush2.msra.mxu0 0.0
    %732 = vmatprep.subr.mxu0 0.0
    %733 = vmatpush2.msra.mxu0 0.0
    %734 = vmatprep.subr.mxu0 0.0
    %735 = vmatpush2.msra.mxu0 0.0
    %736 = vmatprep.subr.mxu0 0.0
    %737 = vmatpush2.msra.mxu0 0.0
    %738 = vmatprep.subr.mxu0 0.0
    %739 = vmatpush2.msra.mxu0 0.0
    %740 = vmatprep.subr.mxu0 0.0
    %741 = vmatpush2.msra.mxu0 0.0
    %742 = vmatprep.subr.mxu0 0.0
    %743 = vmatpush2.msra.mxu0 0.0
    %744 = vmatprep.subr.mxu0 0.0
    %745 = vmatpush2.msra.mxu0 0.0
    %746 = vmatprep.subr.mxu0 0.0
    %747 = vmatpush2.msra.mxu0 0.0
    %748 = vmatprep.subr.mxu0 0.0
    %749 = vmatpush2.msra.mxu0 0.0
    %750 = vmatprep.subr.mxu0 0.0
    %751 = vmatpush2.msra.mxu0 0.0
    %752 = vmatprep.subr.mxu0 0.0
    %753 = vmatpush2.msra.mxu0 0.0
    %754 = vmatprep.subr.mxu0 0.0
    %755 = vmatpush2.msra.mxu0 0.0
    %756 = vmatprep.subr.mxu0 0.0
    %757 = vmatpush2.msra.mxu0 0.0
    %758 = vmatprep.mubr.f32.mxu0 0.0
    %759 = vmatmul.mubr.f32.gmra.mxu0 %v645
    %v760 = vpop.f32.mrf.mxu0
    %v761 = vadd.f32 0.0, %v760
    %v762 = vpop.f32.mrf.mxu0
    %763 = vmatprep.mubr.f32.mxu0 0.0
    %764 = vmatmul.mubr.f32.gmra.mxu0 %v646
    %v765 = vpop.f32.mrf.mxu0
    %v766 = vadd.f32 0.0, %v765
    %v767 = vpop.f32.mrf.mxu0
    %768 = vmatprep.mubr.f32.mxu0 0.0
    %769 = vmatmul.mubr.f32.gmra.mxu0 %v647
    %v770 = vpop.f32.mrf.mxu0
    %v771 = vadd.f32 0.0, %v770
    %v772 = vpop.f32.mrf.mxu0
    %773 = vmatprep.mubr.f32.mxu0 0.0
    %774 = vmatmul.mubr.f32.gmra.mxu0 %v648
    %v775 = vpop.f32.mrf.mxu0
    %v776 = vadd.f32 0.0, %v775
    %v777 = vpop.f32.mrf.mxu0
    %778 = vdwg.mxu0
    %779 = vmatprep.subr.mxu0 0.0
    %780 = vmatpush1.msra.mxu0 %v676
    %781 = vmatprep.subr.mxu0 0.0
    %782 = vmatpush1.msra.mxu0 %v675
    %783 = vmatprep.subr.mxu0 0.0
    %784 = vmatpush1.msra.mxu0 %v674
    %785 = vmatprep.subr.mxu0 0.0
    %786 = vmatpush1.msra.mxu0 %v673
    %787 = vmatprep.subr.mxu0 0.0
    %788 = vmatpush1.msra.mxu0 %v672
    %789 = vmatprep.subr.mxu0 0.0
    %790 = vmatpush1.msra.mxu0 %v671
    %791 = vmatprep.subr.mxu0 0.0
    %792 = vmatpush1.msra.mxu0 %v670
    %793 = vmatprep.subr.mxu0 0.0
    %794 = vmatpush1.msra.mxu0 %v669
    %795 = vmatprep.subr.mxu0 0.0
    %796 = vmatpush1.msra.mxu0 %v668
    %797 = vmatprep.subr.mxu0 0.0
    %798 = vmatpush1.msra.mxu0 %v667
    %799 = vmatprep.subr.mxu0 0.0
    %800 = vmatpush1.msra.mxu0 %v666
    %801 = vmatprep.subr.mxu0 0.0
    %802 = vmatpush1.msra.mxu0 %v665
    %803 = vmatprep.subr.mxu0 0.0
    %804 = vmatpush1.msra.mxu0 %v664
    %805 = vmatprep.subr.mxu0 0.0
    %806 = vmatpush1.msra.mxu0 %v663
    %807 = vmatprep.subr.mxu0 0.0
    %808 = vmatpush1.msra.mxu0 %v662
    %809 = vmatprep.subr.mxu0 0.0
    %810 = vmatpush1.msra.mxu0 %v661
    %811 = vmatprep.subr.mxu0 0.0
    %812 = vmatpush2.msra.mxu0 0.0
    %813 = vmatprep.subr.mxu0 0.0
    %814 = vmatpush2.msra.mxu0 0.0
    %815 = vmatprep.subr.mxu0 0.0
    %816 = vmatpush2.msra.mxu0 0.0
    %817 = vmatprep.subr.mxu0 0.0
    %818 = vmatpush2.msra.mxu0 0.0
    %819 = vmatprep.subr.mxu0 0.0
    %820 = vmatpush2.msra.mxu0 0.0
    %821 = vmatprep.subr.mxu0 0.0
    %822 = vmatpush2.msra.mxu0 0.0
    %823 = vmatprep.subr.mxu0 0.0
    %824 = vmatpush2.msra.mxu0 0.0
    %825 = vmatprep.subr.mxu0 0.0
    %826 = vmatpush2.msra.mxu0 0.0
    %827 = vmatprep.subr.mxu0 0.0
    %828 = vmatpush2.msra.mxu0 0.0
    %829 = vmatprep.subr.mxu0 0.0
    %830 = vmatpush2.msra.mxu0 0.0
    %831 = vmatprep.subr.mxu0 0.0
    %832 = vmatpush2.msra.mxu0 0.0
    %833 = vmatprep.subr.mxu0 0.0
    %834 = vmatpush2.msra.mxu0 0.0
    %835 = vmatprep.subr.mxu0 0.0
    %836 = vmatpush2.msra.mxu0 0.0
    %837 = vmatprep.subr.mxu0 0.0
    %838 = vmatpush2.msra.mxu0 0.0
    %839 = vmatprep.subr.mxu0 0.0
    %840 = vmatpush2.msra.mxu0 0.0
    %841 = vmatprep.subr.mxu0 0.0
    %842 = vmatpush2.msra.mxu0 0.0
    %843 = vmatprep.mubr.f32.mxu0 0.0
    %844 = vmatmul.mubr.f32.gmra.mxu0 %v657
    %v845 = vpop.f32.mrf.mxu0
    %v846 = vadd.f32 %v761, %v845
    %v847 = vpop.f32.mrf.mxu0
    %848 = vmatprep.mubr.f32.mxu0 0.0
    %849 = vmatmul.mubr.f32.gmra.mxu0 %v658
    %v850 = vpop.f32.mrf.mxu0
    %v851 = vadd.f32 %v766, %v850
    %v852 = vpop.f32.mrf.mxu0
    %853 = vmatprep.mubr.f32.mxu0 0.0
    %854 = vmatmul.mubr.f32.gmra.mxu0 %v659
    %v855 = vpop.f32.mrf.mxu0
    %v856 = vadd.f32 %v771, %v855
    %v857 = vpop.f32.mrf.mxu0
    %858 = vmatprep.mubr.f32.mxu0 0.0
    %859 = vmatmul.mubr.f32.gmra.mxu0 %v660
    %v860 = vpop.f32.mrf.mxu0
    %v861 = vadd.f32 %v776, %v860
    %v862 = vpop.f32.mrf.mxu0
    %863 = vdwg.mxu0
    %v864 = vld [vmem:[#allocation3 + $0x2] sm:$0xff]
    %v865 = vld [vmem:[#allocation3 + $0xa] sm:$0xff]
    %v866 = vld [vmem:[#allocation3 + $0x1a] sm:$0xff]
    %v867 = vld [vmem:[#allocation3 + $0x22] sm:$0xff]
    %s868 = scalar_lea.vmem [#allocation9], 256
    %v869 = vld [vmem:[%s868] sm:$0xff]
    %v870 = vld [vmem:[%s868 + $0x8] sm:$0xff]
    %v871 = vld [vmem:[%s868 + $0x10] sm:$0xff]
    %v872 = vld [vmem:[%s868 + $0x18] sm:$0xff]
    %v873 = vld [vmem:[%s868 + $0x20] sm:$0xff]
    %v874 = vld [vmem:[%s868 + $0x28] sm:$0xff]
    %v875 = vld [vmem:[%s868 + $0x30] sm:$0xff]
    %v876 = vld [vmem:[%s868 + $0x38] sm:$0xff]
    %v877 = vld [vmem:[%s868 + $0x40] sm:$0xff]
    %v878 = vld [vmem:[%s868 + $0x48] sm:$0xff]
    %v879 = vld [vmem:[%s868 + $0x50] sm:$0xff]
    %v880 = vld [vmem:[%s868 + $0x58] sm:$0xff]
    %v881 = vld [vmem:[%s868 + $0x60] sm:$0xff]
    %v882 = vld [vmem:[%s868 + $0x68] sm:$0xff]
    %v883 = vld [vmem:[%s868 + $0x70] sm:$0xff]
    %v884 = vld [vmem:[%s868 + $0x78] sm:$0xff]
    %885 = vmatprep.subr.mxu0 0.0
    %886 = vmatpush1.msra.mxu0 %v884
    %887 = vmatprep.subr.mxu0 0.0
    %888 = vmatpush1.msra.mxu0 %v883
    %889 = vmatprep.subr.mxu0 0.0
    %890 = vmatpush1.msra.mxu0 %v882
    %891 = vmatprep.subr.mxu0 0.0
    %892 = vmatpush1.msra.mxu0 %v881
    %893 = vmatprep.subr.mxu0 0.0
    %894 = vmatpush1.msra.mxu0 %v880
    %895 = vmatprep.subr.mxu0 0.0
    %896 = vmatpush1.msra.mxu0 %v879
    %897 = vmatprep.subr.mxu0 0.0
    %898 = vmatpush1.msra.mxu0 %v878
    %899 = vmatprep.subr.mxu0 0.0
    %900 = vmatpush1.msra.mxu0 %v877
    %901 = vmatprep.subr.mxu0 0.0
    %902 = vmatpush1.msra.mxu0 %v876
    %903 = vmatprep.subr.mxu0 0.0
    %904 = vmatpush1.msra.mxu0 %v875
    %905 = vmatprep.subr.mxu0 0.0
    %906 = vmatpush1.msra.mxu0 %v874
    %907 = vmatprep.subr.mxu0 0.0
    %908 = vmatpush1.msra.mxu0 %v873
    %909 = vmatprep.subr.mxu0 0.0
    %910 = vmatpush1.msra.mxu0 %v872
    %911 = vmatprep.subr.mxu0 0.0
    %912 = vmatpush1.msra.mxu0 %v871
    %913 = vmatprep.subr.mxu0 0.0
    %914 = vmatpush1.msra.mxu0 %v870
    %915 = vmatprep.subr.mxu0 0.0
    %916 = vmatpush1.msra.mxu0 %v869
    %917 = vmatprep.subr.mxu0 0.0
    %918 = vmatpush2.msra.mxu0 0.0
    %919 = vmatprep.subr.mxu0 0.0
    %920 = vmatpush2.msra.mxu0 0.0
    %921 = vmatprep.subr.mxu0 0.0
    %922 = vmatpush2.msra.mxu0 0.0
    %923 = vmatprep.subr.mxu0 0.0
    %924 = vmatpush2.msra.mxu0 0.0
    %925 = vmatprep.subr.mxu0 0.0
    %926 = vmatpush2.msra.mxu0 0.0
    %927 = vmatprep.subr.mxu0 0.0
    %928 = vmatpush2.msra.mxu0 0.0
    %929 = vmatprep.subr.mxu0 0.0
    %930 = vmatpush2.msra.mxu0 0.0
    %931 = vmatprep.subr.mxu0 0.0
    %932 = vmatpush2.msra.mxu0 0.0
    %933 = vmatprep.subr.mxu0 0.0
    %934 = vmatpush2.msra.mxu0 0.0
    %935 = vmatprep.subr.mxu0 0.0
    %936 = vmatpush2.msra.mxu0 0.0
    %937 = vmatprep.subr.mxu0 0.0
    %938 = vmatpush2.msra.mxu0 0.0
    %939 = vmatprep.subr.mxu0 0.0
    %940 = vmatpush2.msra.mxu0 0.0
    %941 = vmatprep.subr.mxu0 0.0
    %942 = vmatpush2.msra.mxu0 0.0
    %943 = vmatprep.subr.mxu0 0.0
    %944 = vmatpush2.msra.mxu0 0.0
    %945 = vmatprep.subr.mxu0 0.0
    %946 = vmatpush2.msra.mxu0 0.0
    %947 = vmatprep.subr.mxu0 0.0
    %948 = vmatpush2.msra.mxu0 0.0
    %949 = vmatprep.mubr.f32.mxu0 0.0
    %950 = vmatmul.mubr.f32.gmra.mxu0 %v864
    %v951 = vpop.f32.mrf.mxu0
    %v952 = vadd.f32 0.0, %v951
    %v953 = vpop.f32.mrf.mxu0
    %954 = vmatprep.mubr.f32.mxu0 0.0
    %955 = vmatmul.mubr.f32.gmra.mxu0 %v865
    %v956 = vpop.f32.mrf.mxu0
    %v957 = vadd.f32 0.0, %v956
    %v958 = vpop.f32.mrf.mxu0
    %959 = vmatprep.mubr.f32.mxu0 0.0
    %960 = vmatmul.mubr.f32.gmra.mxu0 %v866
    %v961 = vpop.f32.mrf.mxu0
    %v962 = vadd.f32 0.0, %v961
    %v963 = vpop.f32.mrf.mxu0
    %964 = vmatprep.mubr.f32.mxu0 0.0
    %965 = vmatmul.mubr.f32.gmra.mxu0 %v867
    %v966 = vpop.f32.mrf.mxu0
    %v967 = vadd.f32 0.0, %v966
    %v968 = vpop.f32.mrf.mxu0
    %969 = vdwg.mxu0
    %v970 = vadd.f32 %v846, %v952
    %v971 = vadd.f32 %v851, %v957
    %v972 = vadd.f32 %v856, %v962
    %v973 = vadd.f32 %v861, %v967
    %v974 = vld [vmem:[%s5] sm:$0x1]
    %v975 = vld [vmem:[%s6] sm:$0x1]
    %v976 = vadd.f32 %v970, %v971
    %v977 = vadd.f32 %v976, %v972
    %v978 = vadd.f32 %v977, %v973
    %v979 = vrot.slane %v978, 4
    %v980 = vadd.f32 %v978, %v979
    %v981 = vrot.slane %v980, 2
    %v982 = vadd.f32 %v980, %v981
    %v983 = vrot.slane %v982, 1
    %v984 = vadd.f32 %v982, %v983
    %v985 = vmul.f32 %v970, %v970
    %v986 = vmul.f32 %v971, %v971
    %v987 = vmul.f32 %v972, %v972
    %v988 = vmul.f32 %v973, %v973
    %v989 = vadd.f32 %v985, %v986
    %v990 = vadd.f32 %v989, %v987
    %v991 = vadd.f32 %v990, %v988
    %v992 = vrot.slane %v991, 4
    %v993 = vadd.f32 %v991, %v992
    %v994 = vrot.slane %v993, 2
    %v995 = vadd.f32 %v993, %v994
    %v996 = vrot.slane %v995, 1
    %v997 = vadd.f32 %v995, %v996
    %998 = vmatprep.subr.mxu0 0.0
    %999 = vmatpush1.msra.mxu0 %v119
    %1000 = vmatprep.subr.mxu0 0.0
    %1001 = vmatpush1.msra.mxu0 %v118
    %1002 = vmatprep.subr.mxu0 0.0
    %1003 = vmatpush1.msra.mxu0 %v117
    %1004 = vmatprep.subr.mxu0 0.0
    %1005 = vmatpush1.msra.mxu0 %v116
    %1006 = vmatprep.subr.mxu0 0.0
    %1007 = vmatpush1.msra.mxu0 %v115
    %1008 = vmatprep.subr.mxu0 0.0
    %1009 = vmatpush1.msra.mxu0 %v114
    %1010 = vmatprep.subr.mxu0 0.0
    %1011 = vmatpush1.msra.mxu0 %v113
    %1012 = vmatprep.subr.mxu0 0.0
    %1013 = vmatpush1.msra.mxu0 %v112
    %1014 = vmatprep.subr.mxu0 0.0
    %1015 = vmatpush1.msra.mxu0 %v111
    %1016 = vmatprep.subr.mxu0 0.0
    %1017 = vmatpush1.msra.mxu0 %v110
    %1018 = vmatprep.subr.mxu0 0.0
    %1019 = vmatpush1.msra.mxu0 %v109
    %1020 = vmatprep.subr.mxu0 0.0
    %1021 = vmatpush1.msra.mxu0 %v108
    %1022 = vmatprep.subr.mxu0 0.0
    %1023 = vmatpush1.msra.mxu0 %v107
    %1024 = vmatprep.subr.mxu0 0.0
    %1025 = vmatpush1.msra.mxu0 %v106
    %1026 = vmatprep.subr.mxu0 0.0
    %1027 = vmatpush1.msra.mxu0 %v105
    %1028 = vmatprep.subr.mxu0 0.0
    %1029 = vmatpush1.msra.mxu0 %v104
    %1030 = vmatprep.subr.mxu0 0.0
    %1031 = vmatpush2.msra.mxu0 0.0
    %1032 = vmatprep.subr.mxu0 0.0
    %1033 = vmatpush2.msra.mxu0 0.0
    %1034 = vmatprep.subr.mxu0 0.0
    %1035 = vmatpush2.msra.mxu0 0.0
    %1036 = vmatprep.subr.mxu0 0.0
    %1037 = vmatpush2.msra.mxu0 0.0
    %1038 = vmatprep.subr.mxu0 0.0
    %1039 = vmatpush2.msra.mxu0 0.0
    %1040 = vmatprep.subr.mxu0 0.0
    %1041 = vmatpush2.msra.mxu0 0.0
    %1042 = vmatprep.subr.mxu0 0.0
    %1043 = vmatpush2.msra.mxu0 0.0
    %1044 = vmatprep.subr.mxu0 0.0
    %1045 = vmatpush2.msra.mxu0 0.0
    %1046 = vmatprep.subr.mxu0 0.0
    %1047 = vmatpush2.msra.mxu0 0.0
    %1048 = vmatprep.subr.mxu0 0.0
    %1049 = vmatpush2.msra.mxu0 0.0
    %1050 = vmatprep.subr.mxu0 0.0
    %1051 = vmatpush2.msra.mxu0 0.0
    %1052 = vmatprep.subr.mxu0 0.0
    %1053 = vmatpush2.msra.mxu0 0.0
    %1054 = vmatprep.subr.mxu0 0.0
    %1055 = vmatpush2.msra.mxu0 0.0
    %1056 = vmatprep.subr.mxu0 0.0
    %1057 = vmatpush2.msra.mxu0 0.0
    %1058 = vmatprep.subr.mxu0 0.0
    %1059 = vmatpush2.msra.mxu0 0.0
    %1060 = vmatprep.subr.mxu0 0.0
    %1061 = vmatpush2.msra.mxu0 0.0
    %1062 = vmatprep.mubr.f32.mxu0 0.0
    %1063 = vmatmul.mubr.f32.gmra.mxu0 %v984
    %v1064 = vpop.f32.mrf.mxu0
    %v1065 = vadd.f32 0.0, %v1064
    %v1066 = vpop.f32.mrf.mxu0
    %1067 = vdwg.mxu0
    %1068 = vmatprep.subr.mxu0 0.0
    %1069 = vmatpush1.msra.mxu0 %v119
    %1070 = vmatprep.subr.mxu0 0.0
    %1071 = vmatpush1.msra.mxu0 %v118
    %1072 = vmatprep.subr.mxu0 0.0
    %1073 = vmatpush1.msra.mxu0 %v117
    %1074 = vmatprep.subr.mxu0 0.0
    %1075 = vmatpush1.msra.mxu0 %v116
    %1076 = vmatprep.subr.mxu0 0.0
    %1077 = vmatpush1.msra.mxu0 %v115
    %1078 = vmatprep.subr.mxu0 0.0
    %1079 = vmatpush1.msra.mxu0 %v114
    %1080 = vmatprep.subr.mxu0 0.0
    %1081 = vmatpush1.msra.mxu0 %v113
    %1082 = vmatprep.subr.mxu0 0.0
    %1083 = vmatpush1.msra.mxu0 %v112
    %1084 = vmatprep.subr.mxu0 0.0
    %1085 = vmatpush1.msra.mxu0 %v111
    %1086 = vmatprep.subr.mxu0 0.0
    %1087 = vmatpush1.msra.mxu0 %v110
    %1088 = vmatprep.subr.mxu0 0.0
    %1089 = vmatpush1.msra.mxu0 %v109
    %1090 = vmatprep.subr.mxu0 0.0
    %1091 = vmatpush1.msra.mxu0 %v108
    %1092 = vmatprep.subr.mxu0 0.0
    %1093 = vmatpush1.msra.mxu0 %v107
    %1094 = vmatprep.subr.mxu0 0.0
    %1095 = vmatpush1.msra.mxu0 %v106
    %1096 = vmatprep.subr.mxu0 0.0
    %1097 = vmatpush1.msra.mxu0 %v105
    %1098 = vmatprep.subr.mxu0 0.0
    %1099 = vmatpush1.msra.mxu0 %v104
    %1100 = vmatprep.subr.mxu0 0.0
    %1101 = vmatpush2.msra.mxu0 0.0
    %1102 = vmatprep.subr.mxu0 0.0
    %1103 = vmatpush2.msra.mxu0 0.0
    %1104 = vmatprep.subr.mxu0 0.0
    %1105 = vmatpush2.msra.mxu0 0.0
    %1106 = vmatprep.subr.mxu0 0.0
    %1107 = vmatpush2.msra.mxu0 0.0
    %1108 = vmatprep.subr.mxu0 0.0
    %1109 = vmatpush2.msra.mxu0 0.0
    %1110 = vmatprep.subr.mxu0 0.0
    %1111 = vmatpush2.msra.mxu0 0.0
    %1112 = vmatprep.subr.mxu0 0.0
    %1113 = vmatpush2.msra.mxu0 0.0
    %1114 = vmatprep.subr.mxu0 0.0
    %1115 = vmatpush2.msra.mxu0 0.0
    %1116 = vmatprep.subr.mxu0 0.0
    %1117 = vmatpush2.msra.mxu0 0.0
    %1118 = vmatprep.subr.mxu0 0.0
    %1119 = vmatpush2.msra.mxu0 0.0
    %1120 = vmatprep.subr.mxu0 0.0
    %1121 = vmatpush2.msra.mxu0 0.0
    %1122 = vmatprep.subr.mxu0 0.0
    %1123 = vmatpush2.msra.mxu0 0.0
    %1124 = vmatprep.subr.mxu0 0.0
    %1125 = vmatpush2.msra.mxu0 0.0
    %1126 = vmatprep.subr.mxu0 0.0
    %1127 = vmatpush2.msra.mxu0 0.0
    %1128 = vmatprep.subr.mxu0 0.0
    %1129 = vmatpush2.msra.mxu0 0.0
    %1130 = vmatprep.subr.mxu0 0.0
    %1131 = vmatpush2.msra.mxu0 0.0
    %1132 = vmatprep.mubr.f32.mxu0 0.0
    %1133 = vmatmul.mubr.f32.gmra.mxu0 %v997
    %v1134 = vpop.f32.mrf.mxu0
    %v1135 = vadd.f32 0.0, %v1134
    %v1136 = vpop.f32.mrf.mxu0
    %1137 = vdwg.mxu0
    %v1138 = vmul.f32 %v1065, %v1065
    %v1139 = vsub.f32 %v1135, %v1138
    %v1140 = vmax.f32 %v1139, 0.0
    %v1141 = vadd.f32 %v1140, 1e-05
    %v1142 = vrsqrt.pop %v1141
    %v1143 = vmul.f32 %v974, %v1142
    %v1145 = vlaneseq
    %v1146 = vshrl.u32 %v1145, 7
    %v1147 = vsub.s32 0, %v1146
    %v1148 = vrot.slane %v1143, %v1147
    %v1150 = vmul.f32 %v970, %v1148
    %v1151 = vmul.f32 %v971, %v1148
    %v1152 = vmul.f32 %v972, %v1148
    %v1153 = vmul.f32 %v973, %v1148
    %v1154 = vmul.f32 %v1065, %v1143
    %v1155 = vsub.f32 %v975, %v1154
    %v1157 = vlaneseq
    %v1158 = vshrl.u32 %v1157, 7
    %v1159 = vsub.s32 0, %v1158
    %v1160 = vrot.slane %v1155, %v1159
    %v1162 = vadd.f32 %v1150, %v1160
    %v1163 = vadd.f32 %v1151, %v1160
    %v1164 = vadd.f32 %v1152, %v1160
    %v1165 = vadd.f32 %v1153, %v1160
    %v1166 = vld [vmem:[#allocation10] sm:$0xff]
    %v1167 = vld [vmem:[#allocation10 + $0x8] sm:$0xff]
    %v1168 = vld [vmem:[#allocation10 + $0x10] sm:$0xff]
    %v1169 = vld [vmem:[#allocation10 + $0x18] sm:$0xff]
    %v1170 = vld [vmem:[#allocation10 + $0x20] sm:$0xff]
    %v1171 = vld [vmem:[#allocation10 + $0x28] sm:$0xff]
    %v1172 = vld [vmem:[#allocation10 + $0x30] sm:$0xff]
    %v1173 = vld [vmem:[#allocation10 + $0x38] sm:$0xff]
    %v1174 = vld [vmem:[#allocation10 + $0x40] sm:$0xff]
    %v1175 = vld [vmem:[#allocation10 + $0x48] sm:$0xff]
    %v1176 = vld [vmem:[#allocation10 + $0x50] sm:$0xff]
    %v1177 = vld [vmem:[#allocation10 + $0x58] sm:$0xff]
    %v1178 = vld [vmem:[#allocation10 + $0x60] sm:$0xff]
    %v1179 = vld [vmem:[#allocation10 + $0x68] sm:$0xff]
    %v1180 = vld [vmem:[#allocation10 + $0x70] sm:$0xff]
    %v1181 = vld [vmem:[#allocation10 + $0x78] sm:$0xff]
    %v1182 = vld [vmem:[%s8] sm:$0x1]
    %v1184 = vlaneseq
    %v1185 = vshrl.u32 %v1184, 7
    %v1186 = vsub.s32 0, %v1185
    %v1187 = vrot.slane %v1182, %v1186
    %1189 = vmatprep.subr.mxu0 0.0
    %1190 = vmatpush1.msra.mxu0 %v1181
    %1191 = vmatprep.subr.mxu0 0.0
    %1192 = vmatpush1.msra.mxu0 %v1180
    %1193 = vmatprep.subr.mxu0 0.0
    %1194 = vmatpush1.msra.mxu0 %v1179
    %1195 = vmatprep.subr.mxu0 0.0
    %1196 = vmatpush1.msra.mxu0 %v1178
    %1197 = vmatprep.subr.mxu0 0.0
    %1198 = vmatpush1.msra.mxu0 %v1177
    %1199 = vmatprep.subr.mxu0 0.0
    %1200 = vmatpush1.msra.mxu0 %v1176
    %1201 = vmatprep.subr.mxu0 0.0
    %1202 = vmatpush1.msra.mxu0 %v1175
    %1203 = vmatprep.subr.mxu0 0.0
    %1204 = vmatpush1.msra.mxu0 %v1174
    %1205 = vmatprep.subr.mxu0 0.0
    %1206 = vmatpush1.msra.mxu0 %v1173
    %1207 = vmatprep.subr.mxu0 0.0
    %1208 = vmatpush1.msra.mxu0 %v1172
    %1209 = vmatprep.subr.mxu0 0.0
    %1210 = vmatpush1.msra.mxu0 %v1171
    %1211 = vmatprep.subr.mxu0 0.0
    %1212 = vmatpush1.msra.mxu0 %v1170
    %1213 = vmatprep.subr.mxu0 0.0
    %1214 = vmatpush1.msra.mxu0 %v1169
    %1215 = vmatprep.subr.mxu0 0.0
    %1216 = vmatpush1.msra.mxu0 %v1168
    %1217 = vmatprep.subr.mxu0 0.0
    %1218 = vmatpush1.msra.mxu0 %v1167
    %1219 = vmatprep.subr.mxu0 0.0
    %1220 = vmatpush1.msra.mxu0 %v1166
    %1221 = vmatprep.subr.mxu0 0.0
    %1222 = vmatpush2.msra.mxu0 0.0
    %1223 = vmatprep.subr.mxu0 0.0
    %1224 = vmatpush2.msra.mxu0 0.0
    %1225 = vmatprep.subr.mxu0 0.0
    %1226 = vmatpush2.msra.mxu0 0.0
    %1227 = vmatprep.subr.mxu0 0.0
    %1228 = vmatpush2.msra.mxu0 0.0
    %1229 = vmatprep.subr.mxu0 0.0
    %1230 = vmatpush2.msra.mxu0 0.0
    %1231 = vmatprep.subr.mxu0 0.0
    %1232 = vmatpush2.msra.mxu0 0.0
    %1233 = vmatprep.subr.mxu0 0.0
    %1234 = vmatpush2.msra.mxu0 0.0
    %1235 = vmatprep.subr.mxu0 0.0
    %1236 = vmatpush2.msra.mxu0 0.0
    %1237 = vmatprep.subr.mxu0 0.0
    %1238 = vmatpush2.msra.mxu0 0.0
    %1239 = vmatprep.subr.mxu0 0.0
    %1240 = vmatpush2.msra.mxu0 0.0
    %1241 = vmatprep.subr.mxu0 0.0
    %1242 = vmatpush2.msra.mxu0 0.0
    %1243 = vmatprep.subr.mxu0 0.0
    %1244 = vmatpush2.msra.mxu0 0.0
    %1245 = vmatprep.subr.mxu0 0.0
    %1246 = vmatpush2.msra.mxu0 0.0
    %1247 = vmatprep.subr.mxu0 0.0
    %1248 = vmatpush2.msra.mxu0 0.0
    %1249 = vmatprep.subr.mxu0 0.0
    %1250 = vmatpush2.msra.mxu0 0.0
    %1251 = vmatprep.subr.mxu0 0.0
    %1252 = vmatpush2.msra.mxu0 0.0
    %1253 = vmatprep.mubr.f32.mxu0 0.0
    %1254 = vmatmul.mubr.f32.gmra.mxu0 %v132
    %v1255 = vpop.f32.mrf.mxu0
    %v1256 = vadd.f32 %v1187, %v1255
    %v1257 = vpop.f32.mrf.mxu0
    %1258 = vmatprep.mubr.f32.mxu0 0.0
    %1259 = vmatmul.mubr.f32.gmra.mxu0 %v133
    %v1260 = vpop.f32.mrf.mxu0
    %v1261 = vadd.f32 %v1187, %v1260
    %v1262 = vpop.f32.mrf.mxu0
    %1263 = vmatprep.mubr.f32.mxu0 0.0
    %1264 = vmatmul.mubr.f32.gmra.mxu0 %v134
    %v1265 = vpop.f32.mrf.mxu0
    %v1266 = vadd.f32 %v1187, %v1265
    %v1267 = vpop.f32.mrf.mxu0
    %1268 = vmatprep.mubr.f32.mxu0 0.0
    %1269 = vmatmul.mubr.f32.gmra.mxu0 %v135
    %v1270 = vpop.f32.mrf.mxu0
    %v1271 = vadd.f32 %v1187, %v1270
    %v1272 = vpop.f32.mrf.mxu0
    %1273 = vdwg.mxu0
    %v1274 = vadd.f32 %v1162, %v1256
    %v1275 = vadd.f32 %v1163, %v1261
    %v1276 = vadd.f32 %v1164, %v1266
    %v1277 = vadd.f32 %v1165, %v1271
    %v1278 = vmax.f32 %v1274, 0.0
    %v1279 = vmax.f32 %v1275, 0.0
    %v1280 = vmax.f32 %v1276, 0.0
    %v1281 = vmax.f32 %v1277, 0.0
    %1282 = vst [vmem:[#allocation13] sm:$0xff] %v1278
    %1283 = vst [vmem:[#allocation13 + $0x8] sm:$0xff] %v1279
    %1284 = vst [vmem:[#allocation13 + $0x10] sm:$0xff] %v1280
    %1285 = vst [vmem:[#allocation13 + $0x18] sm:$0xff] %v1281
    // Predicated region
    $region62: #{tpu_custom_call.1} parent=1 // pred_check
      _
    $region63: #{tpu_custom_call.1} parent=1 // pred_check_branch
      %1287 = sbr.rel (0) target = $region65
    $region64: #{tpu_custom_call.1} parent=1 // pred_region
      %s1289 = ssub.s32 512, 512
      %1290 = vsyncadd [#allocation6], %s1289
      %s1291 = sshll.u32 [#allocation13], 4
      %s1292 = int_to_ptr.vmem [resolvable:$true] %s1291
      %1297 = dma.vmem_to_hbm [thread:$0]  %s1292, 512, %s10, [#allocation6], 128, 128, 8
    $region65: #{tpu_custom_call.1} parent=1 // pred_fallthru
      _
    // Predicated region
    $region66: #{tpu_custom_call.1} parent=1 // pred_check
      _
    $region67: #{tpu_custom_call.1} parent=1 // pred_check_branch
      %1299 = sbr.rel (0) target = $region69
    $region68: #{tpu_custom_call.1} parent=1 // pred_region
      %1300 = dma.done [#allocation6], 512
    $region69: #{tpu_custom_call.1} parent=1 // pred_fallthru
      _
    %1301 = vsyncpa [#allocation5], 1
    %1302 = vsyncpa [#allocation8], 1
    %1303 = vsyncpa [#allocation11], 1
    %1304 = vsyncpa [#allocation6], 1

</llo_original>
